<compile_context>
chip_gen: v7x
topology: tpu7x:2x2x1
jax: 0.10.0
libtpu: 0.0.40
codegen_flags: <defaults>
</compile_context>

<pallas_src>
import functools

import jax
import jax.numpy as jnp
from jax import lax
from jax.experimental import pallas as pl
from jax.experimental.pallas import tpu as pltpu


def _round_up(x, m):
    return (x + m - 1) // m * m


def hypermod_kernel(
    # VMEM inputs
    v_ref, e_ref,                      # (nvp, Hp), (nep, Hp) f32
    w_v2e_ref, w_e2v_ref,              # (Hp, Hp) mxu_dtype
    b_v_ref, b_e_ref,                  # (1, Hp) f32
    v_weight_ref, e_weight_ref,        # (nvp, 1), (nep, 1) f32
    vidx_col_ref, eidx_row_ref,        # (TE, 1), (1, TE) int32   [phase 0]
    eidx_col_ref, vidx_row_ref,        # (TE, 1), (1, TE) int32   [phase 1]
    v_reg_w_ref, e_reg_w_ref,          # (TE, 1) f32              [ph0 / ph1]
    e_inv_ref, v_inv_ref,              # (nep, 1), (nvp, 1) f32
    # outputs (VMEM-resident accumulators: constant block index over the grid)
    v_out_ref, e_out_ref,              # (nvp, Hp), (nep, Hp) f32
    # scratch
    vew_ref, evw_ref,                  # (nvp, Hp), (nep, Hp) mxu_dtype
    *, edge_linear, v_fac, mxu_dtype,
):
    phase = pl.program_id(0)           # 0: vertex -> edge, 1: edge -> vertex
    k = pl.program_id(1)               # incidence tile index
    last_k = pl.num_programs(1) - 1
    nvp = v_ref.shape[0]
    nep = e_ref.shape[0]
    tile_e = vidx_col_ref.shape[0]

    # ---- phase 0, first tile: dense v->e transform, init accumulators -----
    @pl.when(jnp.logical_and(phase == 0, k == 0))
    def _():
        v = v_ref[...]
        ve = jnp.dot(v.astype(mxu_dtype), w_v2e_ref[...],
                     preferred_element_type=jnp.float32) + b_v_ref[...]
        if not edge_linear:
            ve = jnp.maximum(ve, 0.0)
        vew_ref[...] = (ve * v_weight_ref[...]).astype(mxu_dtype)  # per-vertex msgs
        e_out_ref[...] = e_ref[...]                                # e.clone()
        v_out_ref[...] = v * v_weight_ref[...] * v_fac             # v * v_weight * fac

    # ---- phase 1, first tile: dense e->v transform on the finalized e -----
    @pl.when(jnp.logical_and(phase == 1, k == 0))
    def _():
        ev = jnp.dot(e_out_ref[...].astype(mxu_dtype), w_e2v_ref[...],
                     preferred_element_type=jnp.float32) + b_e_ref[...]
        ev = jnp.maximum(ev, 0.0)
        evw_ref[...] = (ev * e_weight_ref[...]).astype(mxu_dtype)  # per-edge msgs

    # ---- phase 0: MXU gather of vertex messages, MXU scatter_add into e ---
    @pl.when(phase == 0)
    def _():
        g_onehot = (vidx_col_ref[...] ==
                    lax.broadcasted_iota(jnp.int32, (tile_e, nvp), 1)
                    ).astype(mxu_dtype)                              # (TE, nvp)
        gathered = jnp.dot(g_onehot, vew_ref[...],
                           preferred_element_type=jnp.float32)       # (TE, Hp)
        msg = (gathered * v_reg_w_ref[...]).astype(mxu_dtype)        # f32 scale
        s_onehot = (eidx_row_ref[...] ==
                    lax.broadcasted_iota(jnp.int32, (nep, tile_e), 0)
                    ).astype(mxu_dtype)                              # (nep, TE)
        # canonical (M,K)@(K,N) GEMM; f32 accumulation -> exact duplicate sums
        e_out_ref[...] += jnp.dot(s_onehot, msg,
                                  preferred_element_type=jnp.float32)

    # ---- phase 1: MXU gather of edge messages, MXU scatter_add into v -----
    @pl.when(phase == 1)
    def _():
        g_onehot = (eidx_col_ref[...] ==
                    lax.broadcasted_iota(jnp.int32, (tile_e, nep), 1)
                    ).astype(mxu_dtype)                              # (TE, nep)
        gathered = jnp.dot(g_onehot, evw_ref[...],
                           preferred_element_type=jnp.float32)       # (TE, Hp)
        msg = (gathered * e_reg_w_ref[...]).astype(mxu_dtype)
        s_onehot = (vidx_row_ref[...] ==
                    lax.broadcasted_iota(jnp.int32, (nvp, tile_e), 0)
                    ).astype(mxu_dtype)                              # (nvp, TE)
        v_out_ref[...] += jnp.dot(s_onehot, msg,
                                  preferred_element_type=jnp.float32)

    # ---- finalize: multiply by host-precomputed reciprocals ---------------
    @pl.when(jnp.logical_and(phase == 0, k == last_k))
    def _():
        e_out_ref[...] = e_out_ref[...] * e_inv_ref[...]

    @pl.when(jnp.logical_and(phase == 1, k == last_k))
    def _():
        v_out_ref[...] = v_out_ref[...] * v_inv_ref[...]


def hypermod_forward(v, e, params, *, edge_linear=False, predict_edge=False,
                     mxu_dtype=jnp.bfloat16, tile_e=256):
    (w_v2e, w_e2v, b_v, b_e, v_weight, e_weight,
     vert_ids, edge_ids, v_reg_w, e_reg_w, e_reg_sum, v_reg_sum) = params

    nv, H = v.shape
    ne = e.shape[0]
    E = vert_ids.shape[0]

    # Lane-dense hidden dim, sublane-aligned entity dims, lane-dense E tiles.
    Hp = _round_up(H, 128)
    nvp = _round_up(nv, 8)
    nep = _round_up(ne, 8)
    tile_e = max(128, _round_up(tile_e, 128))
    tile_e = min(tile_e, _round_up(E, 128))
    Ep = _round_up(E, tile_e)
    n_etiles = Ep // tile_e

    def pad2(x, rows, cols):
        return jnp.pad(x, ((0, rows - x.shape[0]), (0, cols - x.shape[1])))

    v_p = pad2(v, nvp, Hp)
    e_p = pad2(e, nep, Hp)
    w1_p = pad2(w_v2e, Hp, Hp).astype(mxu_dtype)
    w2_p = pad2(w_e2v, Hp, Hp).astype(mxu_dtype)
    bv_p = pad2(b_v.reshape(1, -1), 1, Hp)
    be_p = pad2(b_e.reshape(1, -1), 1, Hp)
    vw_p = pad2(v_weight, nvp, 1)
    ew_p = pad2(e_weight, nep, 1)
    vrw_p = pad2(v_reg_w, Ep, 1)              # padded incidences get weight 0
    erw_p = pad2(e_reg_w, Ep, 1)
    e_inv_p = pad2(1.0 / e_reg_sum, nep, 1)   # divide -> reciprocal multiply
    v_inv_p = pad2(1.0 / v_reg_sum, nvp, 1)

    # Incidence indices: (TE, 1) columns feed the gather one-hot, (1, TE)
    # lane-major rows feed the pre-transposed scatter one-hot.
    vert_flat = jnp.pad(vert_ids.reshape(-1).astype(jnp.int32), (0, Ep - E))
    edge_flat = jnp.pad(edge_ids.reshape(-1).astype(jnp.int32), (0, Ep - E))
    vidx_col = vert_flat.reshape(Ep, 1)
    eidx_col = edge_flat.reshape(Ep, 1)
    vidx_row = vert_flat.reshape(1, Ep)
    eidx_row = edge_flat.reshape(1, Ep)

    def full(shape):
        return pl.BlockSpec(shape, lambda p, k: (0,) * len(shape))

    # Phase-gated incidence tiles: hold the block index constant in the phase
    # that does not use the array (no per-step re-DMA of unused tiles).
    def col_p0():
        return pl.BlockSpec((tile_e, 1), lambda p, k: (k * (1 - p), 0))

    def col_p1():
        return pl.BlockSpec((tile_e, 1), lambda p, k: (k * p, 0))

    def row_p0():
        return pl.BlockSpec((1, tile_e), lambda p, k: (0, k * (1 - p)))

    def row_p1():
        return pl.BlockSpec((1, tile_e), lambda p, k: (0, k * p))

    kernel = functools.partial(
        hypermod_kernel,
        edge_linear=edge_linear,
        v_fac=4.0 if predict_edge else 1.0,
        mxu_dtype=mxu_dtype)

    grid_spec = pltpu.PrefetchScalarGridSpec(
        num_scalar_prefetch=0,
        grid=(2, n_etiles),                      # (phase, incidence tile)
        in_specs=[
            full((nvp, Hp)), full((nep, Hp)),    # v, e
            full((Hp, Hp)), full((Hp, Hp)),      # W_v2e, W_e2v (mxu_dtype)
            full((1, Hp)), full((1, Hp)),        # b_v, b_e
            full((nvp, 1)), full((nep, 1)),      # v_weight, e_weight
            col_p0(), row_p0(),                  # vidx col (ph0), eidx row (ph0)
            col_p1(), row_p1(),                  # eidx col (ph1), vidx row (ph1)
            col_p0(), col_p1(),                  # v_reg_weight, e_reg_weight
            full((nep, 1)), full((nvp, 1)),      # 1/e_reg_sum, 1/v_reg_sum
        ],
        out_specs=[full((nvp, Hp)), full((nep, Hp))],
        scratch_shapes=[
            pltpu.VMEM((nvp, Hp), mxu_dtype),    # vertex messages (vew)
            pltpu.VMEM((nep, Hp), mxu_dtype),    # edge messages   (evw)
        ],
    )

    # VMEM budget: resident full blocks + scratch + per-tile temporaries,
    # clamped at 85% of this generation's physical VMEM (v7x has only 64 MiB).
    f32 = 4
    mw = jnp.dtype(mxu_dtype).itemsize
    vmem_est = (
        f32 * (2 * (nvp + nep) * Hp + 2 * Hp + 4 * (nvp + nep))
        + mw * (2 * Hp * Hp + (nvp + nep) * Hp)
        + 2 * (3 * 4 * tile_e + 4 * tile_e)
        + mw * tile_e * (nvp + nep + 2 * Hp) + f32 * tile_e * Hp
    )
    try:
        vmem_cap = pltpu.get_tpu_info().vmem_capacity_bytes
    except Exception:
        vmem_cap = 64 * 2**20     # conservative (v7x-sized) fallback
    vmem_limit = int(min(int(0.85 * vmem_cap), max(32 * 2**20, 2 * vmem_est)))

    v_out_p, e_out_p = pl.pallas_call(
        kernel,
        out_shape=(jax.ShapeDtypeStruct((nvp, Hp), jnp.float32),
                   jax.ShapeDtypeStruct((nep, Hp), jnp.float32)),
        grid_spec=grid_spec,
        compiler_params=pltpu.CompilerParams(
            # Both axes reduce into shared resident accumulators and phase 1
            # depends on phase 0 -> both must stay sequential.
            dimension_semantics=("arbitrary", "arbitrary"),
            vmem_limit_bytes=vmem_limit),
    )(v_p, e_p, w1_p, w2_p, bv_p, be_p, vw_p, ew_p,
      vidx_col, eidx_row, eidx_col, vidx_row, vrw_p, erw_p, e_inv_p, v_inv_p)

    return v_out_p[:nv, :H], e_out_p[:ne, :H]


def hypermod_reference(v, e, params, *, edge_linear=False, predict_edge=False,
                       mxu_dtype=jnp.float32):
    """Plain-JAX replica of HyperMod.forward (is_last=True, use_edge_lin=False)."""
    (w_v2e, w_e2v, b_v, b_e, v_weight, e_weight,
     vert_ids, edge_ids, v_reg_w, e_reg_w, e_reg_sum, v_reg_sum) = params

    def dot(a, b):
        return jnp.dot(a.astype(mxu_dtype), b.astype(mxu_dtype),
                       preferred_element_type=jnp.float32)

    ve = dot(v, w_v2e) + b_v
    if not edge_linear:
        ve = jax.nn.relu(ve)
    v_fac = 4.0 if predict_edge else 1.0
    v2 = v * v_weight * v_fac
    ve_g = (ve * v_weight)[vert_ids] * v_reg_w
    e2 = e.at[edge_ids].add(ve_g) / e_reg_sum
    ev = jax.nn.relu(dot(e2, w_e2v) + b_e)
    ev_g = (ev * e_weight)[edge_ids] * e_reg_w
    v2 = v2.at[vert_ids].add(ev_g) / v_reg_sum
    return v2, e2


if __name__ == "__main__":
    # Small synthetic hypergraph: nv vertices, ne hyperedges, E incidences.
    # E=300 with tile_e=128 -> Ep=384 -> 3 incidence tiles: exercises the
    # multi-tile accumulation and phase-gated DMA paths.
    nv, ne, E, H = 24, 12, 300, 32

    key = jax.random.PRNGKey(0)
    keys = jax.random.split(key, 12)

    v = jax.random.normal(keys[0], (nv, H), jnp.float32)
    e = jax.random.normal(keys[1], (ne, H), jnp.float32)

    # Parameters (Parameter(torch.randn(...)) / zeros) — deterministic init.
    w_v2e = jax.random.normal(keys[2], (H, H), jnp.float32)
    w_e2v = jax.random.normal(keys[3], (H, H), jnp.float32)
    b_v = jnp.zeros((1, H), jnp.float32)
    b_e = jnp.zeros((1, H), jnp.float32)

    v_weight = jax.random.uniform(keys[4], (nv, 1), jnp.float32, 0.5, 1.5)
    e_weight = jax.random.uniform(keys[5], (ne, 1), jnp.float32, 0.5, 1.5)
    v_reg_w = jax.random.uniform(keys[6], (E, 1), jnp.float32, 0.5, 1.5)
    e_reg_w = jax.random.uniform(keys[7], (E, 1), jnp.float32, 0.5, 1.5)
    e_reg_sum = jax.random.uniform(keys[8], (ne, 1), jnp.float32, 1.0, 2.0)
    v_reg_sum = jax.random.uniform(keys[9], (nv, 1), jnp.float32, 1.0, 2.0)

    # Incidence list: paper_author[:, 0] = vertex id, paper_author[:, 1] = edge id.
    vert_ids = jax.random.randint(keys[10], (E,), 0, nv, jnp.int32)
    edge_ids = jax.random.randint(keys[11], (E,), 0, ne, jnp.int32)

    params = (w_v2e, w_e2v, b_v, b_e, v_weight, e_weight,
              vert_ids, edge_ids, v_reg_w, e_reg_w, e_reg_sum, v_reg_sum)

    v_out, e_out = hypermod_forward(v, e, params, edge_linear=False,
                                    predict_edge=False,
                                    mxu_dtype=jnp.bfloat16, tile_e=128)
    jax.block_until_ready((v_out, e_out))

    def rel_err(a, b):
        return float(jnp.linalg.norm(a - b) / (jnp.linalg.norm(b) + 1e-30))

    # 1) Mechanics check vs. a reference with matching bf16 dense GEMMs.  The
    #    only extra kernel-side rounding is the bf16 cast of the gather/scatter
    #    messages (one-hot values are exact in bf16, accumulation is f32).
    v_ref_bf, e_ref_bf = hypermod_reference(v, e, params, mxu_dtype=jnp.bfloat16)
    assert rel_err(e_out, e_ref_bf) < 3e-2, "e mismatch (bf16 ref)"
    assert rel_err(v_out, v_ref_bf) < 3e-2, "v mismatch (bf16 ref)"

    # 2) Module-fidelity check vs. the full-f32 reference (looser: the module
    #    uses raw randn weights so activations are large; deviations are bf16
    #    operand rounding only).
    v_ref32, e_ref32 = hypermod_reference(v, e, params, mxu_dtype=jnp.float32)
    assert rel_err(e_out, e_ref32) < 8e-2, "e mismatch (f32 ref)"
    assert rel_err(v_out, v_ref32) < 8e-2, "v mismatch (f32 ref)"

    print("KERNEL_OK")
</pallas_src>

<mosaic_0001>
module attributes {stable_mosaic.version = 11 : i64} {
  func.func @hypermod_kernel(%arg0: i32, %arg1: i32, %arg2: memref<24x128xf32, #tpu.memory_space<vmem>>, %arg3: memref<16x128xf32, #tpu.memory_space<vmem>>, %arg4: memref<128x128xbf16, #tpu.memory_space<vmem>>, %arg5: memref<128x128xbf16, #tpu.memory_space<vmem>>, %arg6: memref<1x128xf32, #tpu.memory_space<vmem>>, %arg7: memref<1x128xf32, #tpu.memory_space<vmem>>, %arg8: memref<24x1xf32, #tpu.memory_space<vmem>>, %arg9: memref<16x1xf32, #tpu.memory_space<vmem>>, %arg10: memref<128x1xi32, #tpu.memory_space<vmem>>, %arg11: memref<1x128xi32, #tpu.memory_space<vmem>>, %arg12: memref<128x1xi32, #tpu.memory_space<vmem>>, %arg13: memref<1x128xi32, #tpu.memory_space<vmem>>, %arg14: memref<128x1xf32, #tpu.memory_space<vmem>>, %arg15: memref<128x1xf32, #tpu.memory_space<vmem>>, %arg16: memref<16x1xf32, #tpu.memory_space<vmem>>, %arg17: memref<24x1xf32, #tpu.memory_space<vmem>>, %arg18: memref<24x128xf32, #tpu.memory_space<vmem>>, %arg19: memref<16x128xf32, #tpu.memory_space<vmem>>, %arg20: memref<24x128xbf16, #tpu.memory_space<vmem>>, %arg21: memref<16x128xbf16, #tpu.memory_space<vmem>>) attributes {dimension_semantics = [#tpu.dimension_semantics<arbitrary>, #tpu.dimension_semantics<arbitrary>], iteration_bounds = array<i64: 2, 3>, scalar_prefetch = 0 : i64, scratch_operands = 2 : i64, tpu.core_type = #tpu.core_type<tc>, window_params = [{pipeline_mode = #tpu.pipeline_mode<synchronous>, transform_indices = @transform_0, window_bounds = array<i64: 24, 128>}, {pipeline_mode = #tpu.pipeline_mode<synchronous>, transform_indices = @transform_1, window_bounds = array<i64: 16, 128>}, {pipeline_mode = #tpu.pipeline_mode<synchronous>, transform_indices = @transform_2, window_bounds = array<i64: 128, 128>}, {pipeline_mode = #tpu.pipeline_mode<synchronous>, transform_indices = @transform_3, window_bounds = array<i64: 128, 128>}, {pipeline_mode = #tpu.pipeline_mode<synchronous>, transform_indices = @transform_4, window_bounds = array<i64: 1, 128>}, {pipeline_mode = #tpu.pipeline_mode<synchronous>, transform_indices = @transform_5, window_bounds = array<i64: 1, 128>}, {pipeline_mode = #tpu.pipeline_mode<synchronous>, transform_indices = @transform_6, window_bounds = array<i64: 24, 1>}, {pipeline_mode = #tpu.pipeline_mode<synchronous>, transform_indices = @transform_7, window_bounds = array<i64: 16, 1>}, {transform_indices = @transform_8, window_bounds = array<i64: 128, 1>}, {transform_indices = @transform_9, window_bounds = array<i64: 1, 128>}, {transform_indices = @transform_10, window_bounds = array<i64: 128, 1>}, {transform_indices = @transform_11, window_bounds = array<i64: 1, 128>}, {transform_indices = @transform_12, window_bounds = array<i64: 128, 1>}, {transform_indices = @transform_13, window_bounds = array<i64: 128, 1>}, {pipeline_mode = #tpu.pipeline_mode<synchronous>, transform_indices = @transform_14, window_bounds = array<i64: 16, 1>}, {pipeline_mode = #tpu.pipeline_mode<synchronous>, transform_indices = @transform_15, window_bounds = array<i64: 24, 1>}, {pipeline_mode = #tpu.pipeline_mode<synchronous>, transform_indices = @transform_16, window_bounds = array<i64: 24, 128>}, {pipeline_mode = #tpu.pipeline_mode<synchronous>, transform_indices = @transform_17, window_bounds = array<i64: 16, 128>}]} {
    %c0_i32 = arith.constant 0 : i32
    %0 = arith.cmpi eq, %arg0, %c0_i32 : i32
    %c0_i32_0 = arith.constant 0 : i32
    %1 = arith.cmpi eq, %arg1, %c0_i32_0 : i32
    %2 = arith.andi %0, %1 : i1
    %3 = arith.extui %2 : i1 to i32
    %c0_i32_1 = arith.constant 0 : i32
    %4 = arith.cmpi ne, %3, %c0_i32_1 : i32
    scf.if %4 {
      %c0 = arith.constant 0 : index
      %c0_13 = arith.constant 0 : index
      %26 = vector.load %arg2[%c0, %c0_13] : memref<24x128xf32, #tpu.memory_space<vmem>>, vector<24x128xf32>
      %27 = arith.truncf %26 : vector<24x128xf32> to vector<24x128xbf16>
      %c0_14 = arith.constant 0 : index
      %c0_15 = arith.constant 0 : index
      %28 = vector.load %arg4[%c0_14, %c0_15] : memref<128x128xbf16, #tpu.memory_space<vmem>>, vector<128x128xbf16>
      %cst = arith.constant dense<0.000000e+00> : vector<24x128xf32>
      %29 = tpu.matmul %27, %28, %cst {dimension_numbers = #tpu.dot_dimension_numbers<[1], [0], [0], [1], [0, 0, 1, 1], [], []>} : vector<24x128xbf16>, vector<128x128xbf16>, vector<24x128xf32> -> vector<24x128xf32>
      %c0_16 = arith.constant 0 : index
      %c0_17 = arith.constant 0 : index
      %30 = vector.load %arg6[%c0_16, %c0_17] : memref<1x128xf32, #tpu.memory_space<vmem>>, vector<1x128xf32>
      %31 = vector.broadcast %30 : vector<1x128xf32> to vector<24x128xf32>
      %32 = arith.addf %29, %31 : vector<24x128xf32>
      %cst_18 = arith.constant 0.000000e+00 : f32
      %33 = vector.broadcast %cst_18 : f32 to vector<24x128xf32>
      %34 = arith.maximumf %32, %33 : vector<24x128xf32>
      %c0_19 = arith.constant 0 : index
      %c0_20 = arith.constant 0 : index
      %35 = vector.load %arg8[%c0_19, %c0_20] : memref<24x1xf32, #tpu.memory_space<vmem>>, vector<24x1xf32>
      %36 = vector.broadcast %35 : vector<24x1xf32> to vector<24x128xf32>
      %37 = arith.mulf %34, %36 : vector<24x128xf32>
      %38 = arith.truncf %37 : vector<24x128xf32> to vector<24x128xbf16>
      %c0_21 = arith.constant 0 : index
      %c0_22 = arith.constant 0 : index
      %39 = vector.load %arg20[%c0_21, %c0_22] : memref<24x128xbf16, #tpu.memory_space<vmem>>, vector<24x128xbf16>
      tpu.vector_store %arg20[%c0_21, %c0_22], %38 {strides = array<i32>} : memref<24x128xbf16, #tpu.memory_space<vmem>>, vector<24x128xbf16>,
      %c0_23 = arith.constant 0 : index
      %c0_24 = arith.constant 0 : index
      %40 = vector.load %arg3[%c0_23, %c0_24] : memref<16x128xf32, #tpu.memory_space<vmem>>, vector<16x128xf32>
      %c0_25 = arith.constant 0 : index
      %c0_26 = arith.constant 0 : index
      %41 = vector.load %arg19[%c0_25, %c0_26] : memref<16x128xf32, #tpu.memory_space<vmem>>, vector<16x128xf32>
      tpu.vector_store %arg19[%c0_25, %c0_26], %40 {strides = array<i32>} : memref<16x128xf32, #tpu.memory_space<vmem>>, vector<16x128xf32>,
      %c0_27 = arith.constant 0 : index
      %c0_28 = arith.constant 0 : index
      %42 = vector.load %arg8[%c0_27, %c0_28] : memref<24x1xf32, #tpu.memory_space<vmem>>, vector<24x1xf32>
      %43 = vector.broadcast %42 : vector<24x1xf32> to vector<24x128xf32>
      %44 = arith.mulf %26, %43 : vector<24x128xf32>
      %cst_29 = arith.constant 1.000000e+00 : f32
      %45 = vector.broadcast %cst_29 : f32 to vector<24x128xf32>
      %46 = arith.mulf %44, %45 : vector<24x128xf32>
      %c0_30 = arith.constant 0 : index
      %c0_31 = arith.constant 0 : index
      %47 = vector.load %arg18[%c0_30, %c0_31] : memref<24x128xf32, #tpu.memory_space<vmem>>, vector<24x128xf32>
      tpu.vector_store %arg18[%c0_30, %c0_31], %46 {strides = array<i32>} : memref<24x128xf32, #tpu.memory_space<vmem>>, vector<24x128xf32>,
    } else {
    }
    %c1_i32 = arith.constant 1 : i32
    %5 = arith.cmpi eq, %arg0, %c1_i32 : i32
    %c0_i32_2 = arith.constant 0 : i32
    %6 = arith.cmpi eq, %arg1, %c0_i32_2 : i32
    %7 = arith.andi %5, %6 : i1
    %8 = arith.extui %7 : i1 to i32
    %c0_i32_3 = arith.constant 0 : i32
    %9 = arith.cmpi ne, %8, %c0_i32_3 : i32
    scf.if %9 {
      %c0 = arith.constant 0 : index
      %c0_13 = arith.constant 0 : index
      %26 = vector.load %arg19[%c0, %c0_13] : memref<16x128xf32, #tpu.memory_space<vmem>>, vector<16x128xf32>
      %27 = arith.truncf %26 : vector<16x128xf32> to vector<16x128xbf16>
      %c0_14 = arith.constant 0 : index
      %c0_15 = arith.constant 0 : index
      %28 = vector.load %arg5[%c0_14, %c0_15] : memref<128x128xbf16, #tpu.memory_space<vmem>>, vector<128x128xbf16>
      %cst = arith.constant dense<0.000000e+00> : vector<16x128xf32>
      %29 = tpu.matmul %27, %28, %cst {dimension_numbers = #tpu.dot_dimension_numbers<[1], [0], [0], [1], [0, 0, 1, 1], [], []>} : vector<16x128xbf16>, vector<128x128xbf16>, vector<16x128xf32> -> vector<16x128xf32>
      %c0_16 = arith.constant 0 : index
      %c0_17 = arith.constant 0 : index
      %30 = vector.load %arg7[%c0_16, %c0_17] : memref<1x128xf32, #tpu.memory_space<vmem>>, vector<1x128xf32>
      %31 = vector.broadcast %30 : vector<1x128xf32> to vector<16x128xf32>
      %32 = arith.addf %29, %31 : vector<16x128xf32>
      %cst_18 = arith.constant 0.000000e+00 : f32
      %33 = vector.broadcast %cst_18 : f32 to vector<16x128xf32>
      %34 = arith.maximumf %32, %33 : vector<16x128xf32>
      %c0_19 = arith.constant 0 : index
      %c0_20 = arith.constant 0 : index
      %35 = vector.load %arg9[%c0_19, %c0_20] : memref<16x1xf32, #tpu.memory_space<vmem>>, vector<16x1xf32>
      %36 = vector.broadcast %35 : vector<16x1xf32> to vector<16x128xf32>
      %37 = arith.mulf %34, %36 : vector<16x128xf32>
      %38 = arith.truncf %37 : vector<16x128xf32> to vector<16x128xbf16>
      %c0_21 = arith.constant 0 : index
      %c0_22 = arith.constant 0 : index
      %39 = vector.load %arg21[%c0_21, %c0_22] : memref<16x128xbf16, #tpu.memory_space<vmem>>, vector<16x128xbf16>
      tpu.vector_store %arg21[%c0_21, %c0_22], %38 {strides = array<i32>} : memref<16x128xbf16, #tpu.memory_space<vmem>>, vector<16x128xbf16>,
    } else {
    }
    %c0_i32_4 = arith.constant 0 : i32
    %10 = arith.cmpi eq, %arg0, %c0_i32_4 : i32
    %11 = arith.extui %10 : i1 to i32
    %c0_i32_5 = arith.constant 0 : i32
    %12 = arith.cmpi ne, %11, %c0_i32_5 : i32
    scf.if %12 {
      %c0 = arith.constant 0 : index
      %c0_13 = arith.constant 0 : index
      %26 = vector.load %arg10[%c0, %c0_13] : memref<128x1xi32, #tpu.memory_space<vmem>>, vector<128x1xi32>
      %27 = tpu.iota {dimensions = array<i32: 1>} : vector<128x24xi32>
      %28 = vector.broadcast %26 : vector<128x1xi32> to vector<128x24xi32>
      %29 = arith.cmpi eq, %28, %27 : vector<128x24xi32>
      %30 = arith.extui %29 : vector<128x24xi1> to vector<128x24xi32>
      %31 = arith.sitofp %30 : vector<128x24xi32> to vector<128x24xf32>
      %32 = arith.truncf %31 : vector<128x24xf32> to vector<128x24xbf16>
      %c0_14 = arith.constant 0 : index
      %c0_15 = arith.constant 0 : index
      %33 = vector.load %arg20[%c0_14, %c0_15] : memref<24x128xbf16, #tpu.memory_space<vmem>>, vector<24x128xbf16>
      %cst = arith.constant dense<0.000000e+00> : vector<128x128xf32>
      %34 = tpu.matmul %32, %33, %cst {dimension_numbers = #tpu.dot_dimension_numbers<[1], [0], [0], [1], [0, 0, 1, 1], [], []>} : vector<128x24xbf16>, vector<24x128xbf16>, vector<128x128xf32> -> vector<128x128xf32>
      %c0_16 = arith.constant 0 : index
      %c0_17 = arith.constant 0 : index
      %35 = vector.load %arg14[%c0_16, %c0_17] : memref<128x1xf32, #tpu.memory_space<vmem>>, vector<128x1xf32>
      %36 = vector.broadcast %35 : vector<128x1xf32> to vector<128x128xf32>
      %37 = arith.mulf %34, %36 : vector<128x128xf32>
      %38 = arith.truncf %37 : vector<128x128xf32> to vector<128x128xbf16>
      %c0_18 = arith.constant 0 : index
      %c0_19 = arith.constant 0 : index
      %39 = vector.load %arg11[%c0_18, %c0_19] : memref<1x128xi32, #tpu.memory_space<vmem>>, vector<1x128xi32>
      %40 = tpu.iota {dimensions = array<i32: 0>} : vector<16x128xi32>
      %41 = vector.broadcast %39 : vector<1x128xi32> to vector<16x128xi32>
      %42 = arith.cmpi eq, %41, %40 : vector<16x128xi32>
      %43 = arith.extui %42 : vector<16x128xi1> to vector<16x128xi32>
      %44 = arith.sitofp %43 : vector<16x128xi32> to vector<16x128xf32>
      %45 = arith.truncf %44 : vector<16x128xf32> to vector<16x128xbf16>
      %c0_20 = arith.constant 0 : index
      %c0_21 = arith.constant 0 : index
      %46 = vector.load %arg19[%c0_20, %c0_21] : memref<16x128xf32, #tpu.memory_space<vmem>>, vector<16x128xf32>
      %cst_22 = arith.constant dense<0.000000e+00> : vector<16x128xf32>
      %47 = tpu.matmul %45, %38, %cst_22 {dimension_numbers = #tpu.dot_dimension_numbers<[1], [0], [0], [1], [0, 0, 1, 1], [], []>} : vector<16x128xbf16>, vector<128x128xbf16>, vector<16x128xf32> -> vector<16x128xf32>
      %48 = arith.addf %46, %47 : vector<16x128xf32>
      %c0_23 = arith.constant 0 : index
      %c0_24 = arith.constant 0 : index
      %49 = vector.load %arg19[%c0_23, %c0_24] : memref<16x128xf32, #tpu.memory_space<vmem>>, vector<16x128xf32>
      tpu.vector_store %arg19[%c0_23, %c0_24], %48 {strides = array<i32>} : memref<16x128xf32, #tpu.memory_space<vmem>>, vector<16x128xf32>,
    } else {
    }
    %c1_i32_6 = arith.constant 1 : i32
    %13 = arith.cmpi eq, %arg0, %c1_i32_6 : i32
    %14 = arith.extui %13 : i1 to i32
    %c0_i32_7 = arith.constant 0 : i32
    %15 = arith.cmpi ne, %14, %c0_i32_7 : i32
    scf.if %15 {
      %c0 = arith.constant 0 : index
      %c0_13 = arith.constant 0 : index
      %26 = vector.load %arg12[%c0, %c0_13] : memref<128x1xi32, #tpu.memory_space<vmem>>, vector<128x1xi32>
      %27 = tpu.iota {dimensions = array<i32: 1>} : vector<128x16xi32>
      %28 = vector.broadcast %26 : vector<128x1xi32> to vector<128x16xi32>
      %29 = arith.cmpi eq, %28, %27 : vector<128x16xi32>
      %30 = arith.extui %29 : vector<128x16xi1> to vector<128x16xi32>
      %31 = arith.sitofp %30 : vector<128x16xi32> to vector<128x16xf32>
      %32 = arith.truncf %31 : vector<128x16xf32> to vector<128x16xbf16>
      %c0_14 = arith.constant 0 : index
      %c0_15 = arith.constant 0 : index
      %33 = vector.load %arg21[%c0_14, %c0_15] : memref<16x128xbf16, #tpu.memory_space<vmem>>, vector<16x128xbf16>
      %cst = arith.constant dense<0.000000e+00> : vector<128x128xf32>
      %34 = tpu.matmul %32, %33, %cst {dimension_numbers = #tpu.dot_dimension_numbers<[1], [0], [0], [1], [0, 0, 1, 1], [], []>} : vector<128x16xbf16>, vector<16x128xbf16>, vector<128x128xf32> -> vector<128x128xf32>
      %c0_16 = arith.constant 0 : index
      %c0_17 = arith.constant 0 : index
      %35 = vector.load %arg15[%c0_16, %c0_17] : memref<128x1xf32, #tpu.memory_space<vmem>>, vector<128x1xf32>
      %36 = vector.broadcast %35 : vector<128x1xf32> to vector<128x128xf32>
      %37 = arith.mulf %34, %36 : vector<128x128xf32>
      %38 = arith.truncf %37 : vector<128x128xf32> to vector<128x128xbf16>
      %c0_18 = arith.constant 0 : index
      %c0_19 = arith.constant 0 : index
      %39 = vector.load %arg13[%c0_18, %c0_19] : memref<1x128xi32, #tpu.memory_space<vmem>>, vector<1x128xi32>
      %40 = tpu.iota {dimensions = array<i32: 0>} : vector<24x128xi32>
      %41 = vector.broadcast %39 : vector<1x128xi32> to vector<24x128xi32>
      %42 = arith.cmpi eq, %41, %40 : vector<24x128xi32>
      %43 = arith.extui %42 : vector<24x128xi1> to vector<24x128xi32>
      %44 = arith.sitofp %43 : vector<24x128xi32> to vector<24x128xf32>
      %45 = arith.truncf %44 : vector<24x128xf32> to vector<24x128xbf16>
      %c0_20 = arith.constant 0 : index
      %c0_21 = arith.constant 0 : index
      %46 = vector.load %arg18[%c0_20, %c0_21] : memref<24x128xf32, #tpu.memory_space<vmem>>, vector<24x128xf32>
      %cst_22 = arith.constant dense<0.000000e+00> : vector<24x128xf32>
      %47 = tpu.matmul %45, %38, %cst_22 {dimension_numbers = #tpu.dot_dimension_numbers<[1], [0], [0], [1], [0, 0, 1, 1], [], []>} : vector<24x128xbf16>, vector<128x128xbf16>, vector<24x128xf32> -> vector<24x128xf32>
      %48 = arith.addf %46, %47 : vector<24x128xf32>
      %c0_23 = arith.constant 0 : index
      %c0_24 = arith.constant 0 : index
      %49 = vector.load %arg18[%c0_23, %c0_24] : memref<24x128xf32, #tpu.memory_space<vmem>>, vector<24x128xf32>
      tpu.vector_store %arg18[%c0_23, %c0_24], %48 {strides = array<i32>} : memref<24x128xf32, #tpu.memory_space<vmem>>, vector<24x128xf32>,
    } else {
    }
    %c0_i32_8 = arith.constant 0 : i32
    %16 = arith.cmpi eq, %arg0, %c0_i32_8 : i32
    %c2_i32 = arith.constant 2 : i32
    %17 = arith.cmpi eq, %arg1, %c2_i32 : i32
    %18 = arith.andi %16, %17 : i1
    %19 = arith.extui %18 : i1 to i32
    %c0_i32_9 = arith.constant 0 : i32
    %20 = arith.cmpi ne, %19, %c0_i32_9 : i32
    scf.if %20 {
      %c0 = arith.constant 0 : index
      %c0_13 = arith.constant 0 : index
      %26 = vector.load %arg19[%c0, %c0_13] : memref<16x128xf32, #tpu.memory_space<vmem>>, vector<16x128xf32>
      %c0_14 = arith.constant 0 : index
      %c0_15 = arith.constant 0 : index
      %27 = vector.load %arg16[%c0_14, %c0_15] : memref<16x1xf32, #tpu.memory_space<vmem>>, vector<16x1xf32>
      %28 = vector.broadcast %27 : vector<16x1xf32> to vector<16x128xf32>
      %29 = arith.mulf %26, %28 : vector<16x128xf32>
      %c0_16 = arith.constant 0 : index
      %c0_17 = arith.constant 0 : index
      %30 = vector.load %arg19[%c0_16, %c0_17] : memref<16x128xf32, #tpu.memory_space<vmem>>, vector<16x128xf32>
      tpu.vector_store %arg19[%c0_16, %c0_17], %29 {strides = array<i32>} : memref<16x128xf32, #tpu.memory_space<vmem>>, vector<16x128xf32>,
    } else {
    }
    %c1_i32_10 = arith.constant 1 : i32
    %21 = arith.cmpi eq, %arg0, %c1_i32_10 : i32
    %c2_i32_11 = arith.constant 2 : i32
    %22 = arith.cmpi eq, %arg1, %c2_i32_11 : i32
    %23 = arith.andi %21, %22 : i1
    %24 = arith.extui %23 : i1 to i32
    %c0_i32_12 = arith.constant 0 : i32
    %25 = arith.cmpi ne, %24, %c0_i32_12 : i32
    scf.if %25 {
      %c0 = arith.constant 0 : index
      %c0_13 = arith.constant 0 : index
      %26 = vector.load %arg18[%c0, %c0_13] : memref<24x128xf32, #tpu.memory_space<vmem>>, vector<24x128xf32>
      %c0_14 = arith.constant 0 : index
      %c0_15 = arith.constant 0 : index
      %27 = vector.load %arg17[%c0_14, %c0_15] : memref<24x1xf32, #tpu.memory_space<vmem>>, vector<24x1xf32>
      %28 = vector.broadcast %27 : vector<24x1xf32> to vector<24x128xf32>
      %29 = arith.mulf %26, %28 : vector<24x128xf32>
      %c0_16 = arith.constant 0 : index
      %c0_17 = arith.constant 0 : index
      %30 = vector.load %arg18[%c0_16, %c0_17] : memref<24x128xf32, #tpu.memory_space<vmem>>, vector<24x128xf32>
      tpu.vector_store %arg18[%c0_16, %c0_17], %29 {strides = array<i32>} : memref<24x128xf32, #tpu.memory_space<vmem>>, vector<24x128xf32>,
    } else {
    }
    return
  }
  func.func @transform_0(%arg0: i32, %arg1: i32) -> (i32, i32) {
    %c0_i32 = arith.constant 0 : i32
    %c0_i32_0 = arith.constant 0 : i32
    %c0_i32_1 = arith.constant 0 : i32
    return %c0_i32, %c0_i32_0 : i32, i32
  }
  func.func @transform_1(%arg0: i32, %arg1: i32) -> (i32, i32) {
    %c0_i32 = arith.constant 0 : i32
    %c0_i32_0 = arith.constant 0 : i32
    %c0_i32_1 = arith.constant 0 : i32
    return %c0_i32, %c0_i32_0 : i32, i32
  }
  func.func @transform_2(%arg0: i32, %arg1: i32) -> (i32, i32) {
    %c0_i32 = arith.constant 0 : i32
    %c0_i32_0 = arith.constant 0 : i32
    %c0_i32_1 = arith.constant 0 : i32
    return %c0_i32, %c0_i32_0 : i32, i32
  }
  func.func @transform_3(%arg0: i32, %arg1: i32) -> (i32, i32) {
    %c0_i32 = arith.constant 0 : i32
    %c0_i32_0 = arith.constant 0 : i32
    %c0_i32_1 = arith.constant 0 : i32
    return %c0_i32, %c0_i32_0 : i32, i32
  }
  func.func @transform_4(%arg0: i32, %arg1: i32) -> (i32, i32) {
    %c0_i32 = arith.constant 0 : i32
    %c0_i32_0 = arith.constant 0 : i32
    %c0_i32_1 = arith.constant 0 : i32
    return %c0_i32, %c0_i32_0 : i32, i32
  }
  func.func @transform_5(%arg0: i32, %arg1: i32) -> (i32, i32) {
    %c0_i32 = arith.constant 0 : i32
    %c0_i32_0 = arith.constant 0 : i32
    %c0_i32_1 = arith.constant 0 : i32
    return %c0_i32, %c0_i32_0 : i32, i32
  }
  func.func @transform_6(%arg0: i32, %arg1: i32) -> (i32, i32) {
    %c0_i32 = arith.constant 0 : i32
    %c0_i32_0 = arith.constant 0 : i32
    %c0_i32_1 = arith.constant 0 : i32
    return %c0_i32, %c0_i32_0 : i32, i32
  }
  func.func @transform_7(%arg0: i32, %arg1: i32) -> (i32, i32) {
    %c0_i32 = arith.constant 0 : i32
    %c0_i32_0 = arith.constant 0 : i32
    %c0_i32_1 = arith.constant 0 : i32
    return %c0_i32, %c0_i32_0 : i32, i32
  }
  func.func @transform_8(%arg0: i32, %arg1: i32) -> (i32, i32) {
    %c1_i32 = arith.constant 1 : i32
    %0 = arith.subi %c1_i32, %arg0 : i32
    %1 = arith.muli %arg1, %0 : i32
    %c0_i32 = arith.constant 0 : i32
    %c0_i32_0 = arith.constant 0 : i32
    return %1, %c0_i32 : i32, i32
  }
  func.func @transform_9(%arg0: i32, %arg1: i32) -> (i32, i32) {
    %c1_i32 = arith.constant 1 : i32
    %0 = arith.subi %c1_i32, %arg0 : i32
    %1 = arith.muli %arg1, %0 : i32
    %c0_i32 = arith.constant 0 : i32
    %c0_i32_0 = arith.constant 0 : i32
    return %c0_i32, %1 : i32, i32
  }
  func.func @transform_10(%arg0: i32, %arg1: i32) -> (i32, i32) {
    %0 = arith.muli %arg1, %arg0 : i32
    %c0_i32 = arith.constant 0 : i32
    %c0_i32_0 = arith.constant 0 : i32
    return %0, %c0_i32 : i32, i32
  }
  func.func @transform_11(%arg0: i32, %arg1: i32) -> (i32, i32) {
    %0 = arith.muli %arg1, %arg0 : i32
    %c0_i32 = arith.constant 0 : i32
    %c0_i32_0 = arith.constant 0 : i32
    return %c0_i32, %0 : i32, i32
  }
  func.func @transform_12(%arg0: i32, %arg1: i32) -> (i32, i32) {
    %c1_i32 = arith.constant 1 : i32
    %0 = arith.subi %c1_i32, %arg0 : i32
    %1 = arith.muli %arg1, %0 : i32
    %c0_i32 = arith.constant 0 : i32
    %c0_i32_0 = arith.constant 0 : i32
    return %1, %c0_i32 : i32, i32
  }
  func.func @transform_13(%arg0: i32, %arg1: i32) -> (i32, i32) {
    %0 = arith.muli %arg1, %arg0 : i32
    %c0_i32 = arith.constant 0 : i32
    %c0_i32_0 = arith.constant 0 : i32
    return %0, %c0_i32 : i32, i32
  }
  func.func @transform_14(%arg0: i32, %arg1: i32) -> (i32, i32) {
    %c0_i32 = arith.constant 0 : i32
    %c0_i32_0 = arith.constant 0 : i32
    %c0_i32_1 = arith.constant 0 : i32
    return %c0_i32, %c0_i32_0 : i32, i32
  }
  func.func @transform_15(%arg0: i32, %arg1: i32) -> (i32, i32) {
    %c0_i32 = arith.constant 0 : i32
    %c0_i32_0 = arith.constant 0 : i32
    %c0_i32_1 = arith.constant 0 : i32
    return %c0_i32, %c0_i32_0 : i32, i32
  }
  func.func @transform_16(%arg0: i32, %arg1: i32) -> (i32, i32) {
    %c0_i32 = arith.constant 0 : i32
    %c0_i32_0 = arith.constant 0 : i32
    %c0_i32_1 = arith.constant 0 : i32
    return %c0_i32, %c0_i32_0 : i32, i32
  }
  func.func @transform_17(%arg0: i32, %arg1: i32) -> (i32, i32) {
    %c0_i32 = arith.constant 0 : i32
    %c0_i32_0 = arith.constant 0 : i32
    %c0_i32_1 = arith.constant 0 : i32
    return %c0_i32, %c0_i32_0 : i32, i32
  }
}

</mosaic_0001>

<llo_original>
// kernel: tpu_custom_call.1
$region0: #{tpu_custom_call.1}
  #allocation0 [shape = 'u32[]', space=smem, size = 0x4, offset = 0x4, fixed_abs, tag = 'smem constant byte address 0x4 - core index']
  #allocation1 [shape = 'u32[144,128]{1,0:T(1,128)}', space=vmem, size = 0x12000, scoped, tag = 'internal scratch']
  #allocation2 [shape = 'bf16[24,128]{1,0:T(8,128)(2,1)}', space=vmem, size = 0x1800, scoped, tag = 'scratch operand']
  #allocation3 [shape = 'bf16[16,128]{1,0:T(16,128)(2,1)}', space=vmem, size = 0x1000, scoped, tag = 'scratch operand']
  %s0 = inlined_call_operand.vmem [shape: f32[24,128], index: 0, kind: input, shape index: {}]
  %s1 = inlined_call_operand.vmem [shape: f32[16,128], index: 1, kind: input, shape index: {}]
  %s2 = inlined_call_operand.vmem [shape: bf16[128,128], index: 2, kind: input, shape index: {}]
  %s3 = inlined_call_operand.vmem [shape: bf16[128,128], index: 3, kind: input, shape index: {}]
  %s4 = inlined_call_operand.vmem [shape: f32[1,128], index: 4, kind: input, shape index: {}]
  %s5 = inlined_call_operand.vmem [shape: f32[1,128], index: 5, kind: input, shape index: {}]
  %s6 = inlined_call_operand.vmem [shape: f32[24,1], index: 6, kind: input, shape index: {}]
  %s7 = inlined_call_operand.vmem [shape: f32[16,1], index: 7, kind: input, shape index: {}]
  %s8 = inlined_call_operand.vmem [shape: s32[384,1], index: 8, kind: input, shape index: {}]
  %s9 = inlined_call_operand.vmem [shape: s32[1,384], index: 9, kind: input, shape index: {}]
  %s10 = inlined_call_operand.vmem [shape: s32[384,1], index: 10, kind: input, shape index: {}]
  %s11 = inlined_call_operand.vmem [shape: s32[1,384], index: 11, kind: input, shape index: {}]
  %s12 = inlined_call_operand.vmem [shape: f32[384,1], index: 12, kind: input, shape index: {}]
  %s13 = inlined_call_operand.vmem [shape: f32[384,1], index: 13, kind: input, shape index: {}]
  %s14 = inlined_call_operand.vmem [shape: f32[16,1], index: 14, kind: input, shape index: {}]
  %s15 = inlined_call_operand.vmem [shape: f32[24,1], index: 15, kind: input, shape index: {}]
  %s16 = inlined_call_operand.hbm [shape: f32[24,128], index: 16, kind: output, shape index: {0}]
  %s17 = inlined_call_operand.hbm [shape: f32[16,128], index: 17, kind: output, shape index: {1}]
  %18 = xla_tuple %s16, %s17
  %s19 = sld [smem:[#allocation0]]
  $region129: #{tpu_custom_call.1} parent=0
    _
  %s21 = ssub.s32 1, %s19
  %s22 = scalar_select 0, %s21, %s19
  $region1: #{tpu_custom_call.1} parent=0
    #allocation4 [shape = 'u8[12288]{0}', space=vmem, size = 0x3000, scoped, tag = 'output window, operand 0, single buffered']
    #allocation5 [shape = 's32[2]{0}', space=sflag, size = 0x8, scoped, tag = 'scoped memory for tpu_custom_call.1']
    #allocation6 [shape = 'u8[8192]{0}', space=vmem, size = 0x2000, scoped, tag = 'output window, operand 1, single buffered']
    #allocation7 [shape = 's32[1]{0}', space=sflag, size = 0x4, scoped, tag = 'scoped memory for tpu_custom_call.1']
    %23 = vsyncpa [#allocation5], 0
    %24 = vsyncpa [#allocation7], 0
    loop: start=0, step=1, limit=8
    $region2: #{tpu_custom_call.1} parent=1 // loop_pre_header
      _
    $region3: #{tpu_custom_call.1} parent=1 // loop_header
      %s26 = sphi 0, %s30
      %p27 = scmp.ge.s32.totalorder %s26, 8
      %s33 = sphi 0, %s45
      %s34 = sphi 0, %s41
      %s35 = sphi 0, %s33
      %s36 = sphi 0, %s34
      %s37 = sphi 0, %s35
      %s38 = sphi 0, %s36
      %s46 = sphi 0, %s46
      %s48 = sphi 0, %s46
      %s49 = sphi 0, %s48
      %s63 = sphi 0, %s49
      %s67 = sphi 0, %s67
      %s69 = sphi 0, %s67
      %s70 = sphi 0, %s69
      %s84 = sphi 0, %s70
      %s88 = sphi 0, %s88
      %s90 = sphi 0, %s88
      %s91 = sphi 0, %s90
      %s105 = sphi 0, %s91
      %s109 = sphi 0, %s109
      %s111 = sphi 0, %s109
      %s112 = sphi 0, %s111
      %s126 = sphi 0, %s112
      %s130 = sphi 0, %s130
      %s132 = sphi 0, %s130
      %s133 = sphi 0, %s132
      %s147 = sphi 0, %s133
      %s151 = sphi 0, %s151
      %s153 = sphi 0, %s151
      %s154 = sphi 0, %s153
      %s168 = sphi 0, %s154
      %s172 = sphi 0, %s172
      %s174 = sphi 0, %s172
      %s175 = sphi 0, %s174
      %s189 = sphi 0, %s175
      %s193 = sphi 0, %s193
      %s195 = sphi 0, %s193
      %s196 = sphi 0, %s195
      %s210 = sphi 0, %s196
      %s220 = sphi 0, %s222
      %s223 = sphi 0, %s220
      %s224 = sphi 0, %s223
      %s240 = sphi 0, %s224
      %s250 = sphi 0, %s252
      %s253 = sphi 0, %s250
      %s254 = sphi 0, %s253
      %s270 = sphi 0, %s254
      %s278 = sphi 0, %s280
      %s281 = sphi 0, %s278
      %s282 = sphi 0, %s281
      %s298 = sphi 0, %s282
      %s306 = sphi 0, %s308
      %s309 = sphi 0, %s306
      %s310 = sphi 0, %s309
      %s326 = sphi 0, %s310
      %s336 = sphi 0, %s338
      %s339 = sphi 0, %s336
      %s340 = sphi 0, %s339
      %s356 = sphi 0, %s340
      %s364 = sphi 0, %s366
      %s367 = sphi 0, %s364
      %s368 = sphi 0, %s367
      %s384 = sphi 0, %s368
      %s388 = sphi 0, %s388
      %s390 = sphi 0, %s388
      %s391 = sphi 0, %s390
      %s405 = sphi 0, %s391
      %s409 = sphi 0, %s409
      %s411 = sphi 0, %s409
      %s412 = sphi 0, %s411
      %s426 = sphi 0, %s412
      %s430 = sphi 0, %s430
      %s432 = sphi 0, %s430
      %s433 = sphi 0, %s432
      %s447 = sphi 0, %s433
      %s451 = sphi 0, %s451
      %s453 = sphi 0, %s451
      %s454 = sphi 0, %s453
      %s468 = sphi 0, %s454
    $region4: #{tpu_custom_call.1} parent=1 // loop_header_branch
      %29 = sbr.rel (%p27) target = $region8
    $region5: #{tpu_custom_call.1} parent=1 // loop_body
      %s31 = ssub.s32 %s26, 1
      %s32 = ssub.s32 %s26, 2
      %s39 = sadd.s32 1, %s34
      %p40 = scmp.ge.s32.totalorder %s39, 3
      %s41 = scalar_select %p40, 0, %s39
      %s42 = sadd.s32 1, %s33
      %s43 = scalar_select %p40, %s42, %s33
      %p44 = scmp.ge.s32.totalorder %s43, 2
      %s45 = scalar_select %p44, 0, %s43
      %s47 = sadd.s32 %s46, 1
      %p50 = scmp.eq.s32.totalorder %s26, 5
      %p51 = scmp.ne.s32.totalorder %s46, %s48
      %p52 = scmp.eq.s32.totalorder %s26, 0
      %p53 = por %p51, %p52
      %p54 = scmp.ne.s32.totalorder %s46, %s48
      %p55 = scmp.eq.s32.totalorder %s31, 5
      %p56 = por %p54, %p55
      %p57 = scmp.ne.s32.totalorder %s48, %s49
      %p58 = scmp.eq.s32.totalorder %s31, 0
      %p59 = por %p57, %p58
      %p60 = scmp.ne.s32.totalorder %s48, %s49
      %p61 = scmp.eq.s32.totalorder %s32, 5
      %p62 = por %p60, %p61
      %p64 = scmp.ne.s32.totalorder %s49, %s63
      %p65 = scmp.eq.s32.totalorder %s32, 0
      %p66 = por %p64, %p65
      %s68 = sadd.s32 %s67, 1
      %p71 = scmp.eq.s32.totalorder %s26, 5
      %p72 = scmp.ne.s32.totalorder %s67, %s69
      %p73 = scmp.eq.s32.totalorder %s26, 0
      %p74 = por %p72, %p73
      %p75 = scmp.ne.s32.totalorder %s67, %s69
      %p76 = scmp.eq.s32.totalorder %s31, 5
      %p77 = por %p75, %p76
      %p78 = scmp.ne.s32.totalorder %s69, %s70
      %p79 = scmp.eq.s32.totalorder %s31, 0
      %p80 = por %p78, %p79
      %p81 = scmp.ne.s32.totalorder %s69, %s70
      %p82 = scmp.eq.s32.totalorder %s32, 5
      %p83 = por %p81, %p82
      %p85 = scmp.ne.s32.totalorder %s70, %s84
      %p86 = scmp.eq.s32.totalorder %s32, 0
      %p87 = por %p85, %p86
      %s89 = sadd.s32 %s88, 1
      %p92 = scmp.eq.s32.totalorder %s26, 5
      %p93 = scmp.ne.s32.totalorder %s88, %s90
      %p94 = scmp.eq.s32.totalorder %s26, 0
      %p95 = por %p93, %p94
      %p96 = scmp.ne.s32.totalorder %s88, %s90
      %p97 = scmp.eq.s32.totalorder %s31, 5
      %p98 = por %p96, %p97
      %p99 = scmp.ne.s32.totalorder %s90, %s91
      %p100 = scmp.eq.s32.totalorder %s31, 0
      %p101 = por %p99, %p100
      %p102 = scmp.ne.s32.totalorder %s90, %s91
      %p103 = scmp.eq.s32.totalorder %s32, 5
      %p104 = por %p102, %p103
      %p106 = scmp.ne.s32.totalorder %s91, %s105
      %p107 = scmp.eq.s32.totalorder %s32, 0
      %p108 = por %p106, %p107
      %s110 = sadd.s32 %s109, 1
      %p113 = scmp.eq.s32.totalorder %s26, 5
      %p114 = scmp.ne.s32.totalorder %s109, %s111
      %p115 = scmp.eq.s32.totalorder %s26, 0
      %p116 = por %p114, %p115
      %p117 = scmp.ne.s32.totalorder %s109, %s111
      %p118 = scmp.eq.s32.totalorder %s31, 5
      %p119 = por %p117, %p118
      %p120 = scmp.ne.s32.totalorder %s111, %s112
      %p121 = scmp.eq.s32.totalorder %s31, 0
      %p122 = por %p120, %p121
      %p123 = scmp.ne.s32.totalorder %s111, %s112
      %p124 = scmp.eq.s32.totalorder %s32, 5
      %p125 = por %p123, %p124
      %p127 = scmp.ne.s32.totalorder %s112, %s126
      %p128 = scmp.eq.s32.totalorder %s32, 0
      %p129 = por %p127, %p128
      %s131 = sadd.s32 %s130, 1
      %p134 = scmp.eq.s32.totalorder %s26, 5
      %p135 = scmp.ne.s32.totalorder %s130, %s132
      %p136 = scmp.eq.s32.totalorder %s26, 0
      %p137 = por %p135, %p136
      %p138 = scmp.ne.s32.totalorder %s130, %s132
      %p139 = scmp.eq.s32.totalorder %s31, 5
      %p140 = por %p138, %p139
      %p141 = scmp.ne.s32.totalorder %s132, %s133
      %p142 = scmp.eq.s32.totalorder %s31, 0
      %p143 = por %p141, %p142
      %p144 = scmp.ne.s32.totalorder %s132, %s133
      %p145 = scmp.eq.s32.totalorder %s32, 5
      %p146 = por %p144, %p145
      %p148 = scmp.ne.s32.totalorder %s133, %s147
      %p149 = scmp.eq.s32.totalorder %s32, 0
      %p150 = por %p148, %p149
      %s152 = sadd.s32 %s151, 1
      %p155 = scmp.eq.s32.totalorder %s26, 5
      %p156 = scmp.ne.s32.totalorder %s151, %s153
      %p157 = scmp.eq.s32.totalorder %s26, 0
      %p158 = por %p156, %p157
      %p159 = scmp.ne.s32.totalorder %s151, %s153
      %p160 = scmp.eq.s32.totalorder %s31, 5
      %p161 = por %p159, %p160
      %p162 = scmp.ne.s32.totalorder %s153, %s154
      %p163 = scmp.eq.s32.totalorder %s31, 0
      %p164 = por %p162, %p163
      %p165 = scmp.ne.s32.totalorder %s153, %s154
      %p166 = scmp.eq.s32.totalorder %s32, 5
      %p167 = por %p165, %p166
      %p169 = scmp.ne.s32.totalorder %s154, %s168
      %p170 = scmp.eq.s32.totalorder %s32, 0
      %p171 = por %p169, %p170
      %s173 = sadd.s32 %s172, 1
      %p176 = scmp.eq.s32.totalorder %s26, 5
      %p177 = scmp.ne.s32.totalorder %s172, %s174
      %p178 = scmp.eq.s32.totalorder %s26, 0
      %p179 = por %p177, %p178
      %p180 = scmp.ne.s32.totalorder %s172, %s174
      %p181 = scmp.eq.s32.totalorder %s31, 5
      %p182 = por %p180, %p181
      %p183 = scmp.ne.s32.totalorder %s174, %s175
      %p184 = scmp.eq.s32.totalorder %s31, 0
      %p185 = por %p183, %p184
      %p186 = scmp.ne.s32.totalorder %s174, %s175
      %p187 = scmp.eq.s32.totalorder %s32, 5
      %p188 = por %p186, %p187
      %p190 = scmp.ne.s32.totalorder %s175, %s189
      %p191 = scmp.eq.s32.totalorder %s32, 0
      %p192 = por %p190, %p191
      %s194 = sadd.s32 %s193, 1
      %p197 = scmp.eq.s32.totalorder %s26, 5
      %p198 = scmp.ne.s32.totalorder %s193, %s195
      %p199 = scmp.eq.s32.totalorder %s26, 0
      %p200 = por %p198, %p199
      %p201 = scmp.ne.s32.totalorder %s193, %s195
      %p202 = scmp.eq.s32.totalorder %s31, 5
      %p203 = por %p201, %p202
      %p204 = scmp.ne.s32.totalorder %s195, %s196
      %p205 = scmp.eq.s32.totalorder %s31, 0
      %p206 = por %p204, %p205
      %p207 = scmp.ne.s32.totalorder %s195, %s196
      %p208 = scmp.eq.s32.totalorder %s32, 5
      %p209 = por %p207, %p208
      %p211 = scmp.ne.s32.totalorder %s196, %s210
      %p212 = scmp.eq.s32.totalorder %s32, 0
      %p213 = por %p211, %p212
      %s214 = ssub.s32 1, %s33
      %s215 = smul.u32 %s34, %s214
      %s216 = ssub.s32 1, %s45
      %s217 = smul.u32 %s41, %s216
      %s218 = ssub.s32 %s215, %s217
      %p219 = scmp.eq.s32.totalorder %s218, 0
      %s221 = sadd.s32 %s220, 1
      %s222 = scalar_select %p219, %s220, %s221
      %p225 = pneg %p219
      %p226 = scmp.eq.s32.totalorder %s26, 5
      %p227 = por %p225, %p226
      %p228 = scmp.ne.s32.totalorder %s220, %s223
      %p229 = scmp.eq.s32.totalorder %s26, 0
      %p230 = por %p228, %p229
      %p231 = scmp.ne.s32.totalorder %s220, %s223
      %p232 = scmp.eq.s32.totalorder %s31, 5
      %p233 = por %p231, %p232
      %p234 = scmp.ne.s32.totalorder %s223, %s224
      %p235 = scmp.eq.s32.totalorder %s31, 0
      %p236 = por %p234, %p235
      %p237 = scmp.ne.s32.totalorder %s223, %s224
      %p238 = scmp.eq.s32.totalorder %s32, 5
      %p239 = por %p237, %p238
      %p241 = scmp.ne.s32.totalorder %s224, %s240
      %p242 = scmp.eq.s32.totalorder %s32, 0
      %p243 = por %p241, %p242
      %s244 = ssub.s32 1, %s33
      %s245 = smul.u32 %s34, %s244
      %s246 = ssub.s32 1, %s45
      %s247 = smul.u32 %s41, %s246
      %s248 = ssub.s32 %s245, %s247
      %p249 = scmp.eq.s32.totalorder %s248, 0
      %s251 = sadd.s32 %s250, 1
      %s252 = scalar_select %p249, %s250, %s251
      %p255 = pneg %p249
      %p256 = scmp.eq.s32.totalorder %s26, 5
      %p257 = por %p255, %p256
      %p258 = scmp.ne.s32.totalorder %s250, %s253
      %p259 = scmp.eq.s32.totalorder %s26, 0
      %p260 = por %p258, %p259
      %p261 = scmp.ne.s32.totalorder %s250, %s253
      %p262 = scmp.eq.s32.totalorder %s31, 5
      %p263 = por %p261, %p262
      %p264 = scmp.ne.s32.totalorder %s253, %s254
      %p265 = scmp.eq.s32.totalorder %s31, 0
      %p266 = por %p264, %p265
      %p267 = scmp.ne.s32.totalorder %s253, %s254
      %p268 = scmp.eq.s32.totalorder %s32, 5
      %p269 = por %p267, %p268
      %p271 = scmp.ne.s32.totalorder %s254, %s270
      %p272 = scmp.eq.s32.totalorder %s32, 0
      %p273 = por %p271, %p272
      %s274 = smul.u32 %s34, %s33
      %s275 = smul.u32 %s41, %s45
      %s276 = ssub.s32 %s274, %s275
      %p277 = scmp.eq.s32.totalorder %s276, 0
      %s279 = sadd.s32 %s278, 1
      %s280 = scalar_select %p277, %s278, %s279
      %p283 = pneg %p277
      %p284 = scmp.eq.s32.totalorder %s26, 5
      %p285 = por %p283, %p284
      %p286 = scmp.ne.s32.totalorder %s278, %s281
      %p287 = scmp.eq.s32.totalorder %s26, 0
      %p288 = por %p286, %p287
      %p289 = scmp.ne.s32.totalorder %s278, %s281
      %p290 = scmp.eq.s32.totalorder %s31, 5
      %p291 = por %p289, %p290
      %p292 = scmp.ne.s32.totalorder %s281, %s282
      %p293 = scmp.eq.s32.totalorder %s31, 0
      %p294 = por %p292, %p293
      %p295 = scmp.ne.s32.totalorder %s281, %s282
      %p296 = scmp.eq.s32.totalorder %s32, 5
      %p297 = por %p295, %p296
      %p299 = scmp.ne.s32.totalorder %s282, %s298
      %p300 = scmp.eq.s32.totalorder %s32, 0
      %p301 = por %p299, %p300
      %s302 = smul.u32 %s34, %s33
      %s303 = smul.u32 %s41, %s45
      %s304 = ssub.s32 %s302, %s303
      %p305 = scmp.eq.s32.totalorder %s304, 0
      %s307 = sadd.s32 %s306, 1
      %s308 = scalar_select %p305, %s306, %s307
      %p311 = pneg %p305
      %p312 = scmp.eq.s32.totalorder %s26, 5
      %p313 = por %p311, %p312
      %p314 = scmp.ne.s32.totalorder %s306, %s309
      %p315 = scmp.eq.s32.totalorder %s26, 0
      %p316 = por %p314, %p315
      %p317 = scmp.ne.s32.totalorder %s306, %s309
      %p318 = scmp.eq.s32.totalorder %s31, 5
      %p319 = por %p317, %p318
      %p320 = scmp.ne.s32.totalorder %s309, %s310
      %p321 = scmp.eq.s32.totalorder %s31, 0
      %p322 = por %p320, %p321
      %p323 = scmp.ne.s32.totalorder %s309, %s310
      %p324 = scmp.eq.s32.totalorder %s32, 5
      %p325 = por %p323, %p324
      %p327 = scmp.ne.s32.totalorder %s310, %s326
      %p328 = scmp.eq.s32.totalorder %s32, 0
      %p329 = por %p327, %p328
      %s330 = ssub.s32 1, %s33
      %s331 = smul.u32 %s34, %s330
      %s332 = ssub.s32 1, %s45
      %s333 = smul.u32 %s41, %s332
      %s334 = ssub.s32 %s331, %s333
      %p335 = scmp.eq.s32.totalorder %s334, 0
      %s337 = sadd.s32 %s336, 1
      %s338 = scalar_select %p335, %s336, %s337
      %p341 = pneg %p335
      %p342 = scmp.eq.s32.totalorder %s26, 5
      %p343 = por %p341, %p342
      %p344 = scmp.ne.s32.totalorder %s336, %s339
      %p345 = scmp.eq.s32.totalorder %s26, 0
      %p346 = por %p344, %p345
      %p347 = scmp.ne.s32.totalorder %s336, %s339
      %p348 = scmp.eq.s32.totalorder %s31, 5
      %p349 = por %p347, %p348
      %p350 = scmp.ne.s32.totalorder %s339, %s340
      %p351 = scmp.eq.s32.totalorder %s31, 0
      %p352 = por %p350, %p351
      %p353 = scmp.ne.s32.totalorder %s339, %s340
      %p354 = scmp.eq.s32.totalorder %s32, 5
      %p355 = por %p353, %p354
      %p357 = scmp.ne.s32.totalorder %s340, %s356
      %p358 = scmp.eq.s32.totalorder %s32, 0
      %p359 = por %p357, %p358
      %s360 = smul.u32 %s34, %s33
      %s361 = smul.u32 %s41, %s45
      %s362 = ssub.s32 %s360, %s361
      %p363 = scmp.eq.s32.totalorder %s362, 0
      %s365 = sadd.s32 %s364, 1
      %s366 = scalar_select %p363, %s364, %s365
      %p369 = pneg %p363
      %p370 = scmp.eq.s32.totalorder %s26, 5
      %p371 = por %p369, %p370
      %p372 = scmp.ne.s32.totalorder %s364, %s367
      %p373 = scmp.eq.s32.totalorder %s26, 0
      %p374 = por %p372, %p373
      %p375 = scmp.ne.s32.totalorder %s364, %s367
      %p376 = scmp.eq.s32.totalorder %s31, 5
      %p377 = por %p375, %p376
      %p378 = scmp.ne.s32.totalorder %s367, %s368
      %p379 = scmp.eq.s32.totalorder %s31, 0
      %p380 = por %p378, %p379
      %p381 = scmp.ne.s32.totalorder %s367, %s368
      %p382 = scmp.eq.s32.totalorder %s32, 5
      %p383 = por %p381, %p382
      %p385 = scmp.ne.s32.totalorder %s368, %s384
      %p386 = scmp.eq.s32.totalorder %s32, 0
      %p387 = por %p385, %p386
      %s389 = sadd.s32 %s388, 1
      %p392 = scmp.eq.s32.totalorder %s26, 5
      %p393 = scmp.ne.s32.totalorder %s388, %s390
      %p394 = scmp.eq.s32.totalorder %s26, 0
      %p395 = por %p393, %p394
      %p396 = scmp.ne.s32.totalorder %s388, %s390
      %p397 = scmp.eq.s32.totalorder %s31, 5
      %p398 = por %p396, %p397
      %p399 = scmp.ne.s32.totalorder %s390, %s391
      %p400 = scmp.eq.s32.totalorder %s31, 0
      %p401 = por %p399, %p400
      %p402 = scmp.ne.s32.totalorder %s390, %s391
      %p403 = scmp.eq.s32.totalorder %s32, 5
      %p404 = por %p402, %p403
      %p406 = scmp.ne.s32.totalorder %s391, %s405
      %p407 = scmp.eq.s32.totalorder %s32, 0
      %p408 = por %p406, %p407
      %s410 = sadd.s32 %s409, 1
      %p413 = scmp.eq.s32.totalorder %s26, 5
      %p414 = scmp.ne.s32.totalorder %s409, %s411
      %p415 = scmp.eq.s32.totalorder %s26, 0
      %p416 = por %p414, %p415
      %p417 = scmp.ne.s32.totalorder %s409, %s411
      %p418 = scmp.eq.s32.totalorder %s31, 5
      %p419 = por %p417, %p418
      %p420 = scmp.ne.s32.totalorder %s411, %s412
      %p421 = scmp.eq.s32.totalorder %s31, 0
      %p422 = por %p420, %p421
      %p423 = scmp.ne.s32.totalorder %s411, %s412
      %p424 = scmp.eq.s32.totalorder %s32, 5
      %p425 = por %p423, %p424
      %p427 = scmp.ne.s32.totalorder %s412, %s426
      %p428 = scmp.eq.s32.totalorder %s32, 0
      %p429 = por %p427, %p428
      %s431 = sadd.s32 %s430, 1
      %p434 = scmp.eq.s32.totalorder %s26, 5
      %p435 = scmp.ne.s32.totalorder %s430, %s432
      %p436 = scmp.eq.s32.totalorder %s26, 0
      %p437 = por %p435, %p436
      %p438 = scmp.ne.s32.totalorder %s430, %s432
      %p439 = scmp.eq.s32.totalorder %s31, 5
      %p440 = por %p438, %p439
      %p441 = scmp.ne.s32.totalorder %s432, %s433
      %p442 = scmp.eq.s32.totalorder %s31, 0
      %p443 = por %p441, %p442
      %p444 = scmp.ne.s32.totalorder %s432, %s433
      %p445 = scmp.eq.s32.totalorder %s32, 5
      %p446 = por %p444, %p445
      %p448 = scmp.ne.s32.totalorder %s433, %s447
      %p449 = scmp.eq.s32.totalorder %s32, 0
      %p450 = por %p448, %p449
      %s452 = sadd.s32 %s451, 1
      %p455 = scmp.eq.s32.totalorder %s26, 5
      %p456 = scmp.ne.s32.totalorder %s451, %s453
      %p457 = scmp.eq.s32.totalorder %s26, 0
      %p458 = por %p456, %p457
      %p459 = scmp.ne.s32.totalorder %s451, %s453
      %p460 = scmp.eq.s32.totalorder %s31, 5
      %p461 = por %p459, %p460
      %p462 = scmp.ne.s32.totalorder %s453, %s454
      %p463 = scmp.eq.s32.totalorder %s31, 0
      %p464 = por %p462, %p463
      %p465 = scmp.ne.s32.totalorder %s453, %s454
      %p466 = scmp.eq.s32.totalorder %s32, 5
      %p467 = por %p465, %p466
      %p469 = scmp.ne.s32.totalorder %s454, %s468
      %p470 = scmp.eq.s32.totalorder %s32, 0
      %p471 = por %p469, %p470
      %p472 = scmp.le.s32.totalorder 1, %s26
      %p473 = scmp.lt.s32.totalorder %s26, 7
      %p474 = pnand %p472, %p473
      %p475 = pneg %p474
      // Predicated region
      $region9: #{tpu_custom_call.1} parent=5 // pred_check
        _
      $region10: #{tpu_custom_call.1} parent=5 // pred_check_branch
        %477 = sbr.rel (%p474) target = $region12
      $region11: #{tpu_custom_call.1} parent=5 // pred_region
        %s478 = ssub.s32 %s26, 1
        // Predicated region
        $region13: #{tpu_custom_call.1} parent=11 // pred_check
          %p479 = pneg %p59
        $region14: #{tpu_custom_call.1} parent=11 // pred_check_branch
          %481 = sbr.rel (%p479) target = $region16
        $region15: #{tpu_custom_call.1} parent=11 // pred_region
          _
        $region16: #{tpu_custom_call.1} parent=11 // pred_fallthru
          _
        // Predicated region
        $region17: #{tpu_custom_call.1} parent=11 // pred_check
          %p482 = pneg %p80
        $region18: #{tpu_custom_call.1} parent=11 // pred_check_branch
          %484 = sbr.rel (%p482) target = $region20
        $region19: #{tpu_custom_call.1} parent=11 // pred_region
          _
        $region20: #{tpu_custom_call.1} parent=11 // pred_fallthru
          _
        // Predicated region
        $region21: #{tpu_custom_call.1} parent=11 // pred_check
          %p485 = pneg %p101
        $region22: #{tpu_custom_call.1} parent=11 // pred_check_branch
          %487 = sbr.rel (%p485) target = $region24
        $region23: #{tpu_custom_call.1} parent=11 // pred_region
          _
        $region24: #{tpu_custom_call.1} parent=11 // pred_fallthru
          _
        // Predicated region
        $region25: #{tpu_custom_call.1} parent=11 // pred_check
          %p488 = pneg %p122
        $region26: #{tpu_custom_call.1} parent=11 // pred_check_branch
          %490 = sbr.rel (%p488) target = $region28
        $region27: #{tpu_custom_call.1} parent=11 // pred_region
          _
        $region28: #{tpu_custom_call.1} parent=11 // pred_fallthru
          _
        // Predicated region
        $region29: #{tpu_custom_call.1} parent=11 // pred_check
          %p491 = pneg %p143
        $region30: #{tpu_custom_call.1} parent=11 // pred_check_branch
          %493 = sbr.rel (%p491) target = $region32
        $region31: #{tpu_custom_call.1} parent=11 // pred_region
          _
        $region32: #{tpu_custom_call.1} parent=11 // pred_fallthru
          _
        // Predicated region
        $region33: #{tpu_custom_call.1} parent=11 // pred_check
          %p494 = pneg %p164
        $region34: #{tpu_custom_call.1} parent=11 // pred_check_branch
          %496 = sbr.rel (%p494) target = $region36
        $region35: #{tpu_custom_call.1} parent=11 // pred_region
          _
        $region36: #{tpu_custom_call.1} parent=11 // pred_fallthru
          _
        // Predicated region
        $region37: #{tpu_custom_call.1} parent=11 // pred_check
          %p497 = pneg %p185
        $region38: #{tpu_custom_call.1} parent=11 // pred_check_branch
          %499 = sbr.rel (%p497) target = $region40
        $region39: #{tpu_custom_call.1} parent=11 // pred_region
          _
        $region40: #{tpu_custom_call.1} parent=11 // pred_fallthru
          _
        // Predicated region
        $region41: #{tpu_custom_call.1} parent=11 // pred_check
          %p500 = pneg %p206
        $region42: #{tpu_custom_call.1} parent=11 // pred_check_branch
          %502 = sbr.rel (%p500) target = $region44
        $region43: #{tpu_custom_call.1} parent=11 // pred_region
          _
        $region44: #{tpu_custom_call.1} parent=11 // pred_fallthru
          _
        // Predicated region
        $region45: #{tpu_custom_call.1} parent=11 // pred_check
          %p503 = pneg %p401
        $region46: #{tpu_custom_call.1} parent=11 // pred_check_branch
          %505 = sbr.rel (%p503) target = $region48
        $region47: #{tpu_custom_call.1} parent=11 // pred_region
          _
        $region48: #{tpu_custom_call.1} parent=11 // pred_fallthru
          _
        // Predicated region
        $region49: #{tpu_custom_call.1} parent=11 // pred_check
          %p506 = pneg %p422
        $region50: #{tpu_custom_call.1} parent=11 // pred_check_branch
          %508 = sbr.rel (%p506) target = $region52
        $region51: #{tpu_custom_call.1} parent=11 // pred_region
          _
        $region52: #{tpu_custom_call.1} parent=11 // pred_fallthru
          _
      $region12: #{tpu_custom_call.1} parent=5 // pred_fallthru
        _
      %p509 = scmp.lt.s32.totalorder %s26, 6
      // Predicated region
      $region53: #{tpu_custom_call.1} parent=5 // pred_check
        %p510 = pneg %p509
      $region54: #{tpu_custom_call.1} parent=5 // pred_check_branch
        %512 = sbr.rel (%p510) target = $region56
      $region55: #{tpu_custom_call.1} parent=5 // pred_region
        // Predicated region
        $region57: #{tpu_custom_call.1} parent=55 // pred_check
          %p513 = pneg %p230
        $region58: #{tpu_custom_call.1} parent=55 // pred_check_branch
          %515 = sbr.rel (%p513) target = $region60
        $region59: #{tpu_custom_call.1} parent=55 // pred_region
          %s516 = ssub.s32 1, %s33
          %s517 = smul.u32 %s34, %s516
          %s518 = smul.u32 16, %s517
          %p519 = scmp.lt.s32.totalorder %s518, 47
          %s520 = scalar_select %p519, %s518, 47
          %s521 = smul.addr %s520, 8
          %s522 = scalar_lea.vmem %s8, %s521
          %s523 = ssub.s32 1, %s33
          %s524 = smul.u32 %s34, %s523
          %s525 = smul.u32 16, %s524
        $region60: #{tpu_custom_call.1} parent=55 // pred_fallthru
          _
        // Predicated region
        $region61: #{tpu_custom_call.1} parent=55 // pred_check
          %p526 = pneg %p260
        $region62: #{tpu_custom_call.1} parent=55 // pred_check_branch
          %528 = sbr.rel (%p526) target = $region64
        $region63: #{tpu_custom_call.1} parent=55 // pred_region
          %s529 = ssub.s32 1, %s33
          %s530 = smul.u32 %s34, %s529
          %p531 = scmp.lt.s32.totalorder %s530, 2
          %s532 = scalar_select %p531, %s530, 2
          %s533 = scalar_lea.vmem %s9, %s532
          %s534 = ssub.s32 1, %s33
          %s535 = smul.u32 %s34, %s534
        $region64: #{tpu_custom_call.1} parent=55 // pred_fallthru
          _
        // Predicated region
        $region65: #{tpu_custom_call.1} parent=55 // pred_check
          %p536 = pneg %p288
        $region66: #{tpu_custom_call.1} parent=55 // pred_check_branch
          %538 = sbr.rel (%p536) target = $region68
        $region67: #{tpu_custom_call.1} parent=55 // pred_region
          %s539 = smul.u32 %s34, %s33
          %s540 = smul.u32 16, %s539
          %p541 = scmp.lt.s32.totalorder %s540, 47
          %s542 = scalar_select %p541, %s540, 47
          %s543 = smul.addr %s542, 8
          %s544 = scalar_lea.vmem %s10, %s543
          %s545 = smul.u32 %s34, %s33
          %s546 = smul.u32 16, %s545
        $region68: #{tpu_custom_call.1} parent=55 // pred_fallthru
          _
        // Predicated region
        $region69: #{tpu_custom_call.1} parent=55 // pred_check
          %p547 = pneg %p316
        $region70: #{tpu_custom_call.1} parent=55 // pred_check_branch
          %549 = sbr.rel (%p547) target = $region72
        $region71: #{tpu_custom_call.1} parent=55 // pred_region
          %s550 = smul.u32 %s34, %s33
          %p551 = scmp.lt.s32.totalorder %s550, 2
          %s552 = scalar_select %p551, %s550, 2
          %s553 = scalar_lea.vmem %s11, %s552
          %s554 = smul.u32 %s34, %s33
        $region72: #{tpu_custom_call.1} parent=55 // pred_fallthru
          _
        // Predicated region
        $region73: #{tpu_custom_call.1} parent=55 // pred_check
          %p555 = pneg %p346
        $region74: #{tpu_custom_call.1} parent=55 // pred_check_branch
          %557 = sbr.rel (%p555) target = $region76
        $region75: #{tpu_custom_call.1} parent=55 // pred_region
          %s558 = ssub.s32 1, %s33
          %s559 = smul.u32 %s34, %s558
          %s560 = smul.u32 16, %s559
          %p561 = scmp.lt.s32.totalorder %s560, 47
          %s562 = scalar_select %p561, %s560, 47
          %s563 = smul.addr %s562, 8
          %s564 = scalar_lea.vmem %s12, %s563
          %s565 = ssub.s32 1, %s33
          %s566 = smul.u32 %s34, %s565
          %s567 = smul.u32 16, %s566
        $region76: #{tpu_custom_call.1} parent=55 // pred_fallthru
          _
        // Predicated region
        $region77: #{tpu_custom_call.1} parent=55 // pred_check
          %p568 = pneg %p374
        $region78: #{tpu_custom_call.1} parent=55 // pred_check_branch
          %570 = sbr.rel (%p568) target = $region80
        $region79: #{tpu_custom_call.1} parent=55 // pred_region
          %s571 = smul.u32 %s34, %s33
          %s572 = smul.u32 16, %s571
          %p573 = scmp.lt.s32.totalorder %s572, 47
          %s574 = scalar_select %p573, %s572, 47
          %s575 = smul.addr %s574, 8
          %s576 = scalar_lea.vmem %s13, %s575
          %s577 = smul.u32 %s34, %s33
          %s578 = smul.u32 16, %s577
        $region80: #{tpu_custom_call.1} parent=55 // pred_fallthru
          _
      $region56: #{tpu_custom_call.1} parent=5 // pred_fallthru
        _
      %p579 = scmp.le.s32.totalorder 1, %s26
      %p580 = scmp.lt.s32.totalorder %s26, 7
      %p581 = pnand %p579, %p580
      %p582 = pneg %p581
      // Predicated region
      $region81: #{tpu_custom_call.1} parent=5 // pred_check
        _
      $region82: #{tpu_custom_call.1} parent=5 // pred_check_branch
        %584 = sbr.rel (%p581) target = $region84
      $region83: #{tpu_custom_call.1} parent=5 // pred_region
        %s585 = ssub.s32 %s26, 1
        %p586 = pneg %p59
        %p587 = pneg %p56
        %p588 = pneg %p80
        %p589 = pneg %p77
        %p590 = pneg %p101
        %p591 = pneg %p98
        %p592 = pneg %p122
        %p593 = pneg %p119
        %p594 = pneg %p143
        %p595 = pneg %p140
        %p596 = pneg %p164
        %p597 = pneg %p161
        %p598 = pneg %p185
        %p599 = pneg %p182
        %p600 = pneg %p206
        %p601 = pneg %p203
        %s602 = ssub.s32 1, %s35
        %s603 = smul.u32 %s36, %s602
        %s604 = smul.u32 16, %s603
        %p605 = scmp.lt.s32.totalorder %s604, 47
        %s606 = scalar_select %p605, %s604, 47
        %s607 = smul.addr %s606, 8
        %s608 = scalar_lea.vmem %s8, %s607
        %p609 = pneg %p236
        %p610 = pneg %p233
        %s611 = ssub.s32 1, %s35
        %s612 = smul.u32 %s36, %s611
        %p613 = scmp.lt.s32.totalorder %s612, 2
        %s614 = scalar_select %p613, %s612, 2
        %s615 = scalar_lea.vmem %s9, %s614
        %p616 = pneg %p266
        %p617 = pneg %p263
        %s618 = smul.u32 %s36, %s35
        %s619 = smul.u32 16, %s618
        %p620 = scmp.lt.s32.totalorder %s619, 47
        %s621 = scalar_select %p620, %s619, 47
        %s622 = smul.addr %s621, 8
        %s623 = scalar_lea.vmem %s10, %s622
        %p624 = pneg %p294
        %p625 = pneg %p291
        %s626 = smul.u32 %s36, %s35
        %p627 = scmp.lt.s32.totalorder %s626, 2
        %s628 = scalar_select %p627, %s626, 2
        %s629 = scalar_lea.vmem %s11, %s628
        %p630 = pneg %p322
        %p631 = pneg %p319
        %s632 = ssub.s32 1, %s35
        %s633 = smul.u32 %s36, %s632
        %s634 = smul.u32 16, %s633
        %p635 = scmp.lt.s32.totalorder %s634, 47
        %s636 = scalar_select %p635, %s634, 47
        %s637 = smul.addr %s636, 8
        %s638 = scalar_lea.vmem %s12, %s637
        %p639 = pneg %p352
        %p640 = pneg %p349
        %s641 = smul.u32 %s36, %s35
        %s642 = smul.u32 16, %s641
        %p643 = scmp.lt.s32.totalorder %s642, 47
        %s644 = scalar_select %p643, %s642, 47
        %s645 = smul.addr %s644, 8
        %s646 = scalar_lea.vmem %s13, %s645
        %p647 = pneg %p380
        %p648 = pneg %p377
        %p649 = pneg %p401
        %p650 = pneg %p398
        %p651 = pneg %p422
        %p652 = pneg %p419
        %p653 = pneg %p443
        %p654 = pneg %p440
        %p655 = pneg %p464
        %p656 = pneg %p461
        %s657 = ssub.s32 1, %s35
        %s658 = smul.u32 %s36, %s657
        %s659 = smul.u32 16, %s658
        %p660 = scmp.lt.s32.totalorder %s659, 47
        %s661 = scalar_select %p660, %s659, 47
        %s662 = smul.addr %s661, 8
        %s663 = scalar_lea.vmem %s8, %s662
        %s664 = ssub.s32 1, %s35
        %s665 = smul.u32 %s36, %s664
        %s666 = smul.u32 16, %s665
        %s667 = ssub.s32 1, %s35
        %s668 = smul.u32 %s36, %s667
        %p669 = scmp.lt.s32.totalorder %s668, 2
        %s670 = scalar_select %p669, %s668, 2
        %s671 = scalar_lea.vmem %s9, %s670
        %s672 = ssub.s32 1, %s35
        %s673 = smul.u32 %s36, %s672
        %s674 = smul.u32 %s36, %s35
        %s675 = smul.u32 16, %s674
        %p676 = scmp.lt.s32.totalorder %s675, 47
        %s677 = scalar_select %p676, %s675, 47
        %s678 = smul.addr %s677, 8
        %s679 = scalar_lea.vmem %s10, %s678
        %s680 = smul.u32 %s36, %s35
        %s681 = smul.u32 16, %s680
        %s682 = smul.u32 %s36, %s35
        %p683 = scmp.lt.s32.totalorder %s682, 2
        %s684 = scalar_select %p683, %s682, 2
        %s685 = scalar_lea.vmem %s11, %s684
        %s686 = smul.u32 %s36, %s35
        %s687 = ssub.s32 1, %s35
        %s688 = smul.u32 %s36, %s687
        %s689 = smul.u32 16, %s688
        %p690 = scmp.lt.s32.totalorder %s689, 47
        %s691 = scalar_select %p690, %s689, 47
        %s692 = smul.addr %s691, 8
        %s693 = scalar_lea.vmem %s12, %s692
        %s694 = ssub.s32 1, %s35
        %s695 = smul.u32 %s36, %s694
        %s696 = smul.u32 16, %s695
        %s697 = smul.u32 %s36, %s35
        %s698 = smul.u32 16, %s697
        %p699 = scmp.lt.s32.totalorder %s698, 47
        %s700 = scalar_select %p699, %s698, 47
        %s701 = smul.addr %s700, 8
        %s702 = scalar_lea.vmem %s13, %s701
        %s703 = smul.u32 %s36, %s35
        %s704 = smul.u32 16, %s703
        %p706 = scmp.eq.s32.totalorder %s35, 0
        %p707 = scmp.eq.s32.totalorder %s36, 0
        %p708 = pnand %p706, %p707
        %p709 = pneg %p708
        // Predicated region
        $region85: #{tpu_custom_call.1} parent=83 // pred_check
          _
        $region86: #{tpu_custom_call.1} parent=83 // pred_check_branch
          %711 = sbr.rel (%p708) target = $region88
        $region87: #{tpu_custom_call.1} parent=83 // pred_region
          %v712 = vld [vmem:[%s0] sm:$0xff]
          %v713 = vld [vmem:[%s0 + $0x8] sm:$0xff]
          %v714 = vld [vmem:[%s0 + $0x10] sm:$0xff]
          %v715 = vpack.c.bf16 %v713, %v712
          %v716 = vpack.c.bf16 %v714, %v714
          %v717 = vld [vmem:[%s2] sm:$0xf]
          %v718 = vld [vmem:[%s2 + $0x4] sm:$0xf]
          %v719 = vld [vmem:[%s2 + $0x8] sm:$0xf]
          %v720 = vld [vmem:[%s2 + $0xc] sm:$0xf]
          %v721 = vld [vmem:[%s2 + $0x10] sm:$0xf]
          %v722 = vld [vmem:[%s2 + $0x14] sm:$0xf]
          %v723 = vld [vmem:[%s2 + $0x18] sm:$0xf]
          %v724 = vld [vmem:[%s2 + $0x1c] sm:$0xf]
          %v725 = vld [vmem:[%s2 + $0x20] sm:$0xf]
          %v726 = vld [vmem:[%s2 + $0x24] sm:$0xf]
          %v727 = vld [vmem:[%s2 + $0x28] sm:$0xf]
          %v728 = vld [vmem:[%s2 + $0x2c] sm:$0xf]
          %v729 = vld [vmem:[%s2 + $0x30] sm:$0xf]
          %v730 = vld [vmem:[%s2 + $0x34] sm:$0xf]
          %v731 = vld [vmem:[%s2 + $0x38] sm:$0xf]
          %v732 = vld [vmem:[%s2 + $0x3c] sm:$0xf]
          %v733 = vld [vmem:[%s4] sm:$0x1]
          %v735 = vlaneseq
          %v736 = vshrl.u32 %v735, 7
          %v737 = vsub.s32 0, %v736
          %v738 = vrot.slane %v733, %v737
          %v756 = vunpack.c.l.b16 %v717
          %v757 = vunpack.c.l.b16 %v718
          %v758 = vunpack.c.l.b16 %v719
          %v759 = vunpack.c.l.b16 %v720
          %v760 = vunpack.c.l.b16 %v721
          %v761 = vunpack.c.l.b16 %v722
          %v762 = vunpack.c.l.b16 %v723
          %v763 = vunpack.c.l.b16 %v724
          %v764 = vunpack.c.l.b16 %v725
          %v765 = vunpack.c.l.b16 %v726
          %v766 = vunpack.c.l.b16 %v727
          %v767 = vunpack.c.l.b16 %v728
          %v768 = vunpack.c.l.b16 %v729
          %v769 = vunpack.c.l.b16 %v730
          %v770 = vunpack.c.l.b16 %v731
          %v771 = vunpack.c.l.b16 %v732
          %v772 = vpack.c.b16 %v757, %v756
          %v773 = vpack.c.b16 %v759, %v758
          %v774 = vpack.c.b16 %v761, %v760
          %v775 = vpack.c.b16 %v763, %v762
          %v776 = vpack.c.b16 %v765, %v764
          %v777 = vpack.c.b16 %v767, %v766
          %v778 = vpack.c.b16 %v769, %v768
          %v779 = vpack.c.b16 %v771, %v770
          %788 = vmatprep.subr.bf16.mxu0 0
          %789 = vmatpush1.bf16.msra.mxu0 %v772
          %790 = vmatprep.subr.bf16.mxu0 0
          %791 = vmatpush1.bf16.msra.mxu0 %v773
          %792 = vmatprep.subr.bf16.mxu0 0
          %793 = vmatpush1.bf16.msra.mxu0 %v774
          %794 = vmatprep.subr.bf16.mxu0 0
          %795 = vmatpush1.bf16.msra.mxu0 %v775
          %796 = vmatprep.subr.bf16.mxu0 0
          %797 = vmatpush1.bf16.msra.mxu0 %v776
          %798 = vmatprep.subr.bf16.mxu0 0
          %799 = vmatpush1.bf16.msra.mxu0 %v777
          %800 = vmatprep.subr.bf16.mxu0 0
          %801 = vmatpush1.bf16.msra.mxu0 %v778
          %802 = vmatprep.subr.bf16.mxu0 0
          %803 = vmatpush1.bf16.msra.mxu0 %v779
          %804 = vmatprep.subr.bf16.mxu0 0
          %805 = vmatpush1.bf16.msra.mxu0 0
          %806 = vmatprep.subr.bf16.mxu0 0
          %807 = vmatpush1.bf16.msra.mxu0 0
          %808 = vmatprep.subr.bf16.mxu0 0
          %809 = vmatpush1.bf16.msra.mxu0 0
          %810 = vmatprep.subr.bf16.mxu0 0
          %811 = vmatpush1.bf16.msra.mxu0 0
          %812 = vmatprep.subr.bf16.mxu0 0
          %813 = vmatpush1.bf16.msra.mxu0 0
          %814 = vmatprep.subr.bf16.mxu0 0
          %815 = vmatpush1.bf16.msra.mxu0 0
          %816 = vmatprep.subr.bf16.mxu0 0
          %817 = vmatpush1.bf16.msra.mxu0 0
          %818 = vmatprep.subr.bf16.mxu0 0
          %819 = vmatpush1.bf16.msra.mxu0 0
          %820 = vmatprep.mubr.bf16.mxu0 0
          %821 = vmatmul.mubr.bf16.gmra.mrb[0].mxu0 %v715
          %v822 = vpop.f32.mrb[0].mxu0
          %v823 = vadd.f32 %v738, %v822
          %v824 = vpop.f32.mrb[0].mxu0
          %v825 = vpop.f32.mrb[0].mxu0
          %v826 = vadd.f32 %v738, %v825
          %v827 = vpop.f32.mrb[0].mxu0
          %828 = vmatprep.mubr.bf16.mxu0 0
          %829 = vmatmul.mubr.bf16.gmra.mrb[0].mxu0 %v716
          %v830 = vpop.f32.mrb[0].mxu0
          %v831 = vadd.f32 %v738, %v830
          %v832 = vpop.f32.mrb[0].mxu0
          %v833 = vpop.f32.mrb[0].mxu0
          %v834 = vpop.f32.mrb[0].mxu0
          %835 = vdwg.mxu0
          %v836 = vmax.f32 %v823, 0.0
          %v837 = vmax.f32 %v826, 0.0
          %v838 = vmax.f32 %v831, 0.0
          %v839 = vld [vmem:[%s6] sm:$0xff]
          %v840 = vld [vmem:[%s6 + $0x8] sm:$0xff]
          %v841 = vld [vmem:[%s6 + $0x10] sm:$0xff]
          %843 = vset.pattern.permute.xlu0 0
          %844 = vperm.xlu0 %843, %v839
          %v845 = vpop.permute.xlu0 %844
          %848 = vset.pattern.permute.xlu0 0
          %849 = vperm.xlu0 %848, %v840
          %v850 = vpop.permute.xlu0 %849
          %853 = vset.pattern.permute.xlu0 0
          %854 = vperm.xlu0 %853, %v841
          %v855 = vpop.permute.xlu0 %854
          %v857 = vmul.f32 %v836, %v845
          %v858 = vmul.f32 %v837, %v850
          %v859 = vmul.f32 %v838, %v855
          %v860 = vpack.c.bf16 %v858, %v857
          %v861 = vpack.c.bf16 %v859, %v859
          %v864 = vunpack.c.l.b16 %v860
          %v865 = vunpack.c.h.b16 %v860
          %v866 = vunpack.c.l.b16 %v861
          %v867 = vpack.c.b16 %v864, %v864
          %v868 = vpack.c.b16 %v865, %v865
          %v869 = vpack.c.b16 %v866, %v866
          %873 = vst [vmem:[#allocation2] sm:$0xf] %v867
          %874 = vst [vmem:[#allocation2 + $0x4] sm:$0xf] %v868
          %875 = vst [vmem:[#allocation2 + $0x8] sm:$0xf] %v869
          %v876 = vld [vmem:[%s1] sm:$0xff]
          %v877 = vld [vmem:[%s1 + $0x8] sm:$0xff]
          %878 = vst [vmem:[#allocation6] sm:$0xff] %v876
          %879 = vst [vmem:[#allocation6 + $0x8] sm:$0xff] %v877
          %v880 = vld [vmem:[%s6] sm:$0xff]
          %v881 = vld [vmem:[%s6 + $0x8] sm:$0xff]
          %v882 = vld [vmem:[%s6 + $0x10] sm:$0xff]
          %884 = vset.pattern.permute.xlu0 0
          %885 = vperm.xlu0 %884, %v880
          %v886 = vpop.permute.xlu0 %885
          %889 = vset.pattern.permute.xlu0 0
          %890 = vperm.xlu0 %889, %v881
          %v891 = vpop.permute.xlu0 %890
          %894 = vset.pattern.permute.xlu0 0
          %895 = vperm.xlu0 %894, %v882
          %v896 = vpop.permute.xlu0 %895
          %v898 = vmul.f32 %v712, %v886
          %v899 = vmul.f32 %v713, %v891
          %v900 = vmul.f32 %v714, %v896
          %901 = vst [vmem:[#allocation4] sm:$0xff] %v898
          %902 = vst [vmem:[#allocation4 + $0x8] sm:$0xff] %v899
          %903 = vst [vmem:[#allocation4 + $0x10] sm:$0xff] %v900
        $region88: #{tpu_custom_call.1} parent=83 // pred_fallthru
          _
        %p904 = scmp.eq.s32.totalorder %s35, 1
        %p905 = pnand %p904, %p707
        %p906 = pneg %p905
        // Predicated region
        $region89: #{tpu_custom_call.1} parent=83 // pred_check
          _
        $region90: #{tpu_custom_call.1} parent=83 // pred_check_branch
          %908 = sbr.rel (%p905) target = $region92
        $region91: #{tpu_custom_call.1} parent=83 // pred_region
          %v909 = vld [vmem:[#allocation6] sm:$0xff]
          %v910 = vld [vmem:[#allocation6 + $0x8] sm:$0xff]
          %v911 = vpack.c.bf16 %v910, %v909
          %v912 = vld [vmem:[%s3] sm:$0xf]
          %v913 = vld [vmem:[%s3 + $0x4] sm:$0xf]
          %v914 = vld [vmem:[%s3 + $0x8] sm:$0xf]
          %v915 = vld [vmem:[%s3 + $0xc] sm:$0xf]
          %v916 = vld [vmem:[%s3 + $0x10] sm:$0xf]
          %v917 = vld [vmem:[%s3 + $0x14] sm:$0xf]
          %v918 = vld [vmem:[%s3 + $0x18] sm:$0xf]
          %v919 = vld [vmem:[%s3 + $0x1c] sm:$0xf]
          %v920 = vld [vmem:[%s3 + $0x20] sm:$0xf]
          %v921 = vld [vmem:[%s3 + $0x24] sm:$0xf]
          %v922 = vld [vmem:[%s3 + $0x28] sm:$0xf]
          %v923 = vld [vmem:[%s3 + $0x2c] sm:$0xf]
          %v924 = vld [vmem:[%s3 + $0x30] sm:$0xf]
          %v925 = vld [vmem:[%s3 + $0x34] sm:$0xf]
          %v926 = vld [vmem:[%s3 + $0x38] sm:$0xf]
          %v927 = vld [vmem:[%s3 + $0x3c] sm:$0xf]
          %v928 = vld [vmem:[%s5] sm:$0x1]
          %v930 = vlaneseq
          %v931 = vshrl.u32 %v930, 7
          %v932 = vsub.s32 0, %v931
          %v933 = vrot.slane %v928, %v932
          %v951 = vunpack.c.l.b16 %v912
          %v952 = vunpack.c.l.b16 %v913
          %v953 = vunpack.c.l.b16 %v914
          %v954 = vunpack.c.l.b16 %v915
          %v955 = vunpack.c.l.b16 %v916
          %v956 = vunpack.c.l.b16 %v917
          %v957 = vunpack.c.l.b16 %v918
          %v958 = vunpack.c.l.b16 %v919
          %v959 = vunpack.c.l.b16 %v920
          %v960 = vunpack.c.l.b16 %v921
          %v961 = vunpack.c.l.b16 %v922
          %v962 = vunpack.c.l.b16 %v923
          %v963 = vunpack.c.l.b16 %v924
          %v964 = vunpack.c.l.b16 %v925
          %v965 = vunpack.c.l.b16 %v926
          %v966 = vunpack.c.l.b16 %v927
          %v967 = vpack.c.b16 %v952, %v951
          %v968 = vpack.c.b16 %v954, %v953
          %v969 = vpack.c.b16 %v956, %v955
          %v970 = vpack.c.b16 %v958, %v957
          %v971 = vpack.c.b16 %v960, %v959
          %v972 = vpack.c.b16 %v962, %v961
          %v973 = vpack.c.b16 %v964, %v963
          %v974 = vpack.c.b16 %v966, %v965
          %983 = vmatprep.subr.bf16.mxu0 0
          %984 = vmatpush1.bf16.msra.mxu0 %v967
          %985 = vmatprep.subr.bf16.mxu0 0
          %986 = vmatpush1.bf16.msra.mxu0 %v968
          %987 = vmatprep.subr.bf16.mxu0 0
          %988 = vmatpush1.bf16.msra.mxu0 %v969
          %989 = vmatprep.subr.bf16.mxu0 0
          %990 = vmatpush1.bf16.msra.mxu0 %v970
          %991 = vmatprep.subr.bf16.mxu0 0
          %992 = vmatpush1.bf16.msra.mxu0 %v971
          %993 = vmatprep.subr.bf16.mxu0 0
          %994 = vmatpush1.bf16.msra.mxu0 %v972
          %995 = vmatprep.subr.bf16.mxu0 0
          %996 = vmatpush1.bf16.msra.mxu0 %v973
          %997 = vmatprep.subr.bf16.mxu0 0
          %998 = vmatpush1.bf16.msra.mxu0 %v974
          %999 = vmatprep.subr.bf16.mxu0 0
          %1000 = vmatpush1.bf16.msra.mxu0 0
          %1001 = vmatprep.subr.bf16.mxu0 0
          %1002 = vmatpush1.bf16.msra.mxu0 0
          %1003 = vmatprep.subr.bf16.mxu0 0
          %1004 = vmatpush1.bf16.msra.mxu0 0
          %1005 = vmatprep.subr.bf16.mxu0 0
          %1006 = vmatpush1.bf16.msra.mxu0 0
          %1007 = vmatprep.subr.bf16.mxu0 0
          %1008 = vmatpush1.bf16.msra.mxu0 0
          %1009 = vmatprep.subr.bf16.mxu0 0
          %1010 = vmatpush1.bf16.msra.mxu0 0
          %1011 = vmatprep.subr.bf16.mxu0 0
          %1012 = vmatpush1.bf16.msra.mxu0 0
          %1013 = vmatprep.subr.bf16.mxu0 0
          %1014 = vmatpush1.bf16.msra.mxu0 0
          %1015 = vmatprep.mubr.bf16.mxu0 0
          %1016 = vmatmul.mubr.bf16.gmra.mrb[0].mxu0 %v911
          %v1017 = vpop.f32.mrb[0].mxu0
          %v1018 = vadd.f32 %v933, %v1017
          %v1019 = vpop.f32.mrb[0].mxu0
          %v1020 = vpop.f32.mrb[0].mxu0
          %v1021 = vadd.f32 %v933, %v1020
          %v1022 = vpop.f32.mrb[0].mxu0
          %1023 = vdwg.mxu0
          %v1024 = vmax.f32 %v1018, 0.0
          %v1025 = vmax.f32 %v1021, 0.0
          %v1026 = vld [vmem:[%s7] sm:$0xff]
          %v1027 = vld [vmem:[%s7 + $0x8] sm:$0xff]
          %1029 = vset.pattern.permute.xlu0 0
          %1030 = vperm.xlu0 %1029, %v1026
          %v1031 = vpop.permute.xlu0 %1030
          %1034 = vset.pattern.permute.xlu0 0
          %1035 = vperm.xlu0 %1034, %v1027
          %v1036 = vpop.permute.xlu0 %1035
          %v1038 = vmul.f32 %v1024, %v1031
          %v1039 = vmul.f32 %v1025, %v1036
          %v1040 = vpack.c.bf16 %v1039, %v1038
          %1041 = vst [vmem:[#allocation3] sm:$0xff] %v1040
        $region92: #{tpu_custom_call.1} parent=83 // pred_fallthru
          _
        // Predicated region
        $region93: #{tpu_custom_call.1} parent=83 // pred_check
          %p1042 = pneg %p706
        $region94: #{tpu_custom_call.1} parent=83 // pred_check_branch
          %1044 = sbr.rel (%p1042) target = $region96
        $region95: #{tpu_custom_call.1} parent=83 // pred_region
          %v1045 = vld [vmem:[%s663] sm:$0xff]
          %v1046 = vld [vmem:[%s663 + $0x8] sm:$0xff]
          %v1047 = vld [vmem:[%s663 + $0x10] sm:$0xff]
          %v1048 = vld [vmem:[%s663 + $0x18] sm:$0xff]
          %v1049 = vld [vmem:[%s663 + $0x20] sm:$0xff]
          %v1050 = vld [vmem:[%s663 + $0x28] sm:$0xff]
          %v1051 = vld [vmem:[%s663 + $0x30] sm:$0xff]
          %v1052 = vld [vmem:[%s663 + $0x38] sm:$0xff]
          %v1053 = vld [vmem:[%s663 + $0x40] sm:$0xff]
          %v1054 = vld [vmem:[%s663 + $0x48] sm:$0xff]
          %v1055 = vld [vmem:[%s663 + $0x50] sm:$0xff]
          %v1056 = vld [vmem:[%s663 + $0x58] sm:$0xff]
          %v1057 = vld [vmem:[%s663 + $0x60] sm:$0xff]
          %v1058 = vld [vmem:[%s663 + $0x68] sm:$0xff]
          %v1059 = vld [vmem:[%s663 + $0x70] sm:$0xff]
          %v1060 = vld [vmem:[%s663 + $0x78] sm:$0xff]
          %v1061 = vlaneseq
          %v1062 = vand.u32 %v1061, 127
          %1063 = vset.pattern.permute.xlu0 0
          %1064 = vperm.xlu0 %1063, %v1045
          %v1065 = vpop.permute.xlu0 %1064
          %1066 = vset.pattern.permute.xlu0 0
          %1067 = vperm.xlu0 %1066, %v1046
          %v1068 = vpop.permute.xlu0 %1067
          %1069 = vset.pattern.permute.xlu0 0
          %1070 = vperm.xlu0 %1069, %v1047
          %v1071 = vpop.permute.xlu0 %1070
          %1072 = vset.pattern.permute.xlu0 0
          %1073 = vperm.xlu0 %1072, %v1048
          %v1074 = vpop.permute.xlu0 %1073
          %1075 = vset.pattern.permute.xlu0 0
          %1076 = vperm.xlu0 %1075, %v1049
          %v1077 = vpop.permute.xlu0 %1076
          %1078 = vset.pattern.permute.xlu0 0
          %1079 = vperm.xlu0 %1078, %v1050
          %v1080 = vpop.permute.xlu0 %1079
          %1081 = vset.pattern.permute.xlu0 0
          %1082 = vperm.xlu0 %1081, %v1051
          %v1083 = vpop.permute.xlu0 %1082
          %1084 = vset.pattern.permute.xlu0 0
          %1085 = vperm.xlu0 %1084, %v1052
          %v1086 = vpop.permute.xlu0 %1085
          %1087 = vset.pattern.permute.xlu0 0
          %1088 = vperm.xlu0 %1087, %v1053
          %v1089 = vpop.permute.xlu0 %1088
          %1090 = vset.pattern.permute.xlu0 0
          %1091 = vperm.xlu0 %1090, %v1054
          %v1092 = vpop.permute.xlu0 %1091
          %1093 = vset.pattern.permute.xlu0 0
          %1094 = vperm.xlu0 %1093, %v1055
          %v1095 = vpop.permute.xlu0 %1094
          %1096 = vset.pattern.permute.xlu0 0
          %1097 = vperm.xlu0 %1096, %v1056
          %v1098 = vpop.permute.xlu0 %1097
          %1099 = vset.pattern.permute.xlu0 0
          %1100 = vperm.xlu0 %1099, %v1057
          %v1101 = vpop.permute.xlu0 %1100
          %1102 = vset.pattern.permute.xlu0 0
          %1103 = vperm.xlu0 %1102, %v1058
          %v1104 = vpop.permute.xlu0 %1103
          %1105 = vset.pattern.permute.xlu0 0
          %1106 = vperm.xlu0 %1105, %v1059
          %v1107 = vpop.permute.xlu0 %1106
          %1108 = vset.pattern.permute.xlu0 0
          %1109 = vperm.xlu0 %1108, %v1060
          %v1110 = vpop.permute.xlu0 %1109
          %vm1111 = vcmp.eq.s32.totalorder %v1065, %v1062
          %vm1112 = vcmp.eq.s32.totalorder %v1068, %v1062
          %vm1113 = vcmp.eq.s32.totalorder %v1071, %v1062
          %vm1114 = vcmp.eq.s32.totalorder %v1074, %v1062
          %vm1115 = vcmp.eq.s32.totalorder %v1077, %v1062
          %vm1116 = vcmp.eq.s32.totalorder %v1080, %v1062
          %vm1117 = vcmp.eq.s32.totalorder %v1083, %v1062
          %vm1118 = vcmp.eq.s32.totalorder %v1086, %v1062
          %vm1119 = vcmp.eq.s32.totalorder %v1089, %v1062
          %vm1120 = vcmp.eq.s32.totalorder %v1092, %v1062
          %vm1121 = vcmp.eq.s32.totalorder %v1095, %v1062
          %vm1122 = vcmp.eq.s32.totalorder %v1098, %v1062
          %vm1123 = vcmp.eq.s32.totalorder %v1101, %v1062
          %vm1124 = vcmp.eq.s32.totalorder %v1104, %v1062
          %vm1125 = vcmp.eq.s32.totalorder %v1107, %v1062
          %vm1126 = vcmp.eq.s32.totalorder %v1110, %v1062
          %v1127 = vsel %vm1111, 1, 0
          %v1128 = vsel %vm1112, 1, 0
          %v1129 = vsel %vm1113, 1, 0
          %v1130 = vsel %vm1114, 1, 0
          %v1131 = vsel %vm1115, 1, 0
          %v1132 = vsel %vm1116, 1, 0
          %v1133 = vsel %vm1117, 1, 0
          %v1134 = vsel %vm1118, 1, 0
          %v1135 = vsel %vm1119, 1, 0
          %v1136 = vsel %vm1120, 1, 0
          %v1137 = vsel %vm1121, 1, 0
          %v1138 = vsel %vm1122, 1, 0
          %v1139 = vsel %vm1123, 1, 0
          %v1140 = vsel %vm1124, 1, 0
          %v1141 = vsel %vm1125, 1, 0
          %v1142 = vsel %vm1126, 1, 0
          %v1143 = vcvt.s32.f32 %v1127
          %v1144 = vcvt.s32.f32 %v1128
          %v1145 = vcvt.s32.f32 %v1129
          %v1146 = vcvt.s32.f32 %v1130
          %v1147 = vcvt.s32.f32 %v1131
          %v1148 = vcvt.s32.f32 %v1132
          %v1149 = vcvt.s32.f32 %v1133
          %v1150 = vcvt.s32.f32 %v1134
          %v1151 = vcvt.s32.f32 %v1135
          %v1152 = vcvt.s32.f32 %v1136
          %v1153 = vcvt.s32.f32 %v1137
          %v1154 = vcvt.s32.f32 %v1138
          %v1155 = vcvt.s32.f32 %v1139
          %v1156 = vcvt.s32.f32 %v1140
          %v1157 = vcvt.s32.f32 %v1141
          %v1158 = vcvt.s32.f32 %v1142
          %v1159 = vpack.c.bf16 %v1144, %v1143
          %v1160 = vpack.c.bf16 %v1146, %v1145
          %v1161 = vpack.c.bf16 %v1148, %v1147
          %v1162 = vpack.c.bf16 %v1150, %v1149
          %v1163 = vpack.c.bf16 %v1152, %v1151
          %v1164 = vpack.c.bf16 %v1154, %v1153
          %v1165 = vpack.c.bf16 %v1156, %v1155
          %v1166 = vpack.c.bf16 %v1158, %v1157
          %v1167 = vld [vmem:[#allocation2] sm:$0xf]
          %v1168 = vld [vmem:[#allocation2 + $0x4] sm:$0xf]
          %v1169 = vld [vmem:[#allocation2 + $0x8] sm:$0xf]
          %v1173 = vunpack.c.l.b16 %v1167
          %v1174 = vunpack.c.l.b16 %v1168
          %v1175 = vunpack.c.l.b16 %v1169
          %v1176 = vpack.c.b16 %v1174, %v1173
          %v1177 = vpack.c.b16 %v1175, %v1175
          %vm1179 = vcmask 195584
          %v1181 = vsel %vm1179, %v1159, 0
          %v1184 = vsel %vm1179, %v1160, 0
          %v1187 = vsel %vm1179, %v1161, 0
          %v1190 = vsel %vm1179, %v1162, 0
          %v1193 = vsel %vm1179, %v1163, 0
          %v1196 = vsel %vm1179, %v1164, 0
          %v1199 = vsel %vm1179, %v1165, 0
          %v1202 = vsel %vm1179, %v1166, 0
          %vm1204 = vcmask 1043456
          %v1206 = vsel %vm1204, %v1177, 0
          %1208 = vmatprep.subr.bf16.mxu0 0
          %1209 = vmatpush1.bf16.msra.mxu0 %v1176
          %1210 = vmatprep.subr.bf16.mxu0 0
          %1211 = vmatpush1.bf16.msra.mxu0 %v1206
          %1212 = vmatprep.subr.bf16.mxu0 0
          %1213 = vmatpush1.bf16.msra.mxu0 0
          %1214 = vmatprep.subr.bf16.mxu0 0
          %1215 = vmatpush1.bf16.msra.mxu0 0
          %1216 = vmatprep.subr.bf16.mxu0 0
          %1217 = vmatpush1.bf16.msra.mxu0 0
          %1218 = vmatprep.subr.bf16.mxu0 0
          %1219 = vmatpush1.bf16.msra.mxu0 0
          %1220 = vmatprep.subr.bf16.mxu0 0
          %1221 = vmatpush1.bf16.msra.mxu0 0
          %1222 = vmatprep.subr.bf16.mxu0 0
          %1223 = vmatpush1.bf16.msra.mxu0 0
          %1224 = vmatprep.subr.bf16.mxu0 0
          %1225 = vmatpush1.bf16.msra.mxu0 0
          %1226 = vmatprep.subr.bf16.mxu0 0
          %1227 = vmatpush1.bf16.msra.mxu0 0
          %1228 = vmatprep.subr.bf16.mxu0 0
          %1229 = vmatpush1.bf16.msra.mxu0 0
          %1230 = vmatprep.subr.bf16.mxu0 0
          %1231 = vmatpush1.bf16.msra.mxu0 0
          %1232 = vmatprep.subr.bf16.mxu0 0
          %1233 = vmatpush1.bf16.msra.mxu0 0
          %1234 = vmatprep.subr.bf16.mxu0 0
          %1235 = vmatpush1.bf16.msra.mxu0 0
          %1236 = vmatprep.subr.bf16.mxu0 0
          %1237 = vmatpush1.bf16.msra.mxu0 0
          %1238 = vmatprep.subr.bf16.mxu0 0
          %1239 = vmatpush1.bf16.msra.mxu0 0
          %1240 = vmatprep.mubr.bf16.mxu0 0
          %1241 = vmatmul.mubr.bf16.gmra.mrb[0].mxu0 %v1181
          %v1242 = vpop.f32.mrb[0].mxu0
          %v1243 = vadd.f32 0.0, %v1242
          %v1244 = vpop.f32.mrb[0].mxu0
          %v1245 = vpop.f32.mrb[0].mxu0
          %v1246 = vadd.f32 0.0, %v1245
          %v1247 = vpop.f32.mrb[0].mxu0
          %1248 = vmatprep.mubr.bf16.mxu0 0
          %1249 = vmatmul.mubr.bf16.gmra.mrb[0].mxu0 %v1184
          %v1250 = vpop.f32.mrb[0].mxu0
          %v1251 = vadd.f32 0.0, %v1250
          %v1252 = vpop.f32.mrb[0].mxu0
          %v1253 = vpop.f32.mrb[0].mxu0
          %v1254 = vadd.f32 0.0, %v1253
          %v1255 = vpop.f32.mrb[0].mxu0
          %1256 = vmatprep.mubr.bf16.mxu0 0
          %1257 = vmatmul.mubr.bf16.gmra.mrb[0].mxu0 %v1187
          %v1258 = vpop.f32.mrb[0].mxu0
          %v1259 = vadd.f32 0.0, %v1258
          %v1260 = vpop.f32.mrb[0].mxu0
          %v1261 = vpop.f32.mrb[0].mxu0
          %v1262 = vadd.f32 0.0, %v1261
          %v1263 = vpop.f32.mrb[0].mxu0
          %1264 = vmatprep.mubr.bf16.mxu0 0
          %1265 = vmatmul.mubr.bf16.gmra.mrb[0].mxu0 %v1190
          %v1266 = vpop.f32.mrb[0].mxu0
          %v1267 = vadd.f32 0.0, %v1266
          %v1268 = vpop.f32.mrb[0].mxu0
          %v1269 = vpop.f32.mrb[0].mxu0
          %v1270 = vadd.f32 0.0, %v1269
          %v1271 = vpop.f32.mrb[0].mxu0
          %1272 = vmatprep.mubr.bf16.mxu0 0
          %1273 = vmatmul.mubr.bf16.gmra.mrb[0].mxu0 %v1193
          %v1274 = vpop.f32.mrb[0].mxu0
          %v1275 = vadd.f32 0.0, %v1274
          %v1276 = vpop.f32.mrb[0].mxu0
          %v1277 = vpop.f32.mrb[0].mxu0
          %v1278 = vadd.f32 0.0, %v1277
          %v1279 = vpop.f32.mrb[0].mxu0
          %1280 = vmatprep.mubr.bf16.mxu0 0
          %1281 = vmatmul.mubr.bf16.gmra.mrb[0].mxu0 %v1196
          %v1282 = vpop.f32.mrb[0].mxu0
          %v1283 = vadd.f32 0.0, %v1282
          %v1284 = vpop.f32.mrb[0].mxu0
          %v1285 = vpop.f32.mrb[0].mxu0
          %v1286 = vadd.f32 0.0, %v1285
          %v1287 = vpop.f32.mrb[0].mxu0
          %1288 = vmatprep.mubr.bf16.mxu0 0
          %1289 = vmatmul.mubr.bf16.gmra.mrb[0].mxu0 %v1199
          %v1290 = vpop.f32.mrb[0].mxu0
          %v1291 = vadd.f32 0.0, %v1290
          %v1292 = vpop.f32.mrb[0].mxu0
          %v1293 = vpop.f32.mrb[0].mxu0
          %v1294 = vadd.f32 0.0, %v1293
          %v1295 = vpop.f32.mrb[0].mxu0
          %1296 = vmatprep.mubr.bf16.mxu0 0
          %1297 = vmatmul.mubr.bf16.gmra.mrb[0].mxu0 %v1202
          %v1298 = vpop.f32.mrb[0].mxu0
          %v1299 = vadd.f32 0.0, %v1298
          %v1300 = vpop.f32.mrb[0].mxu0
          %v1301 = vpop.f32.mrb[0].mxu0
          %v1302 = vadd.f32 0.0, %v1301
          %v1303 = vpop.f32.mrb[0].mxu0
          %1304 = vdwg.mxu0
          %v1305 = vld [vmem:[%s693] sm:$0xff]
          %v1306 = vld [vmem:[%s693 + $0x8] sm:$0xff]
          %v1307 = vld [vmem:[%s693 + $0x10] sm:$0xff]
          %v1308 = vld [vmem:[%s693 + $0x18] sm:$0xff]
          %v1309 = vld [vmem:[%s693 + $0x20] sm:$0xff]
          %v1310 = vld [vmem:[%s693 + $0x28] sm:$0xff]
          %v1311 = vld [vmem:[%s693 + $0x30] sm:$0xff]
          %v1312 = vld [vmem:[%s693 + $0x38] sm:$0xff]
          %v1313 = vld [vmem:[%s693 + $0x40] sm:$0xff]
          %v1314 = vld [vmem:[%s693 + $0x48] sm:$0xff]
          %v1315 = vld [vmem:[%s693 + $0x50] sm:$0xff]
          %v1316 = vld [vmem:[%s693 + $0x58] sm:$0xff]
          %v1317 = vld [vmem:[%s693 + $0x60] sm:$0xff]
          %v1318 = vld [vmem:[%s693 + $0x68] sm:$0xff]
          %v1319 = vld [vmem:[%s693 + $0x70] sm:$0xff]
          %v1320 = vld [vmem:[%s693 + $0x78] sm:$0xff]
          %1322 = vset.pattern.permute.xlu0 0
          %1323 = vperm.xlu0 %1322, %v1305
          %v1324 = vpop.permute.xlu0 %1323
          %1327 = vset.pattern.permute.xlu0 0
          %1328 = vperm.xlu0 %1327, %v1306
          %v1329 = vpop.permute.xlu0 %1328
          %1332 = vset.pattern.permute.xlu0 0
          %1333 = vperm.xlu0 %1332, %v1307
          %v1334 = vpop.permute.xlu0 %1333
          %1337 = vset.pattern.permute.xlu0 0
          %1338 = vperm.xlu0 %1337, %v1308
          %v1339 = vpop.permute.xlu0 %1338
          %1342 = vset.pattern.permute.xlu0 0
          %1343 = vperm.xlu0 %1342, %v1309
          %v1344 = vpop.permute.xlu0 %1343
          %1347 = vset.pattern.permute.xlu0 0
          %1348 = vperm.xlu0 %1347, %v1310
          %v1349 = vpop.permute.xlu0 %1348
          %1352 = vset.pattern.permute.xlu0 0
          %1353 = vperm.xlu0 %1352, %v1311
          %v1354 = vpop.permute.xlu0 %1353
          %1357 = vset.pattern.permute.xlu0 0
          %1358 = vperm.xlu0 %1357, %v1312
          %v1359 = vpop.permute.xlu0 %1358
          %1362 = vset.pattern.permute.xlu0 0
          %1363 = vperm.xlu0 %1362, %v1313
          %v1364 = vpop.permute.xlu0 %1363
          %1367 = vset.pattern.permute.xlu0 0
          %1368 = vperm.xlu0 %1367, %v1314
          %v1369 = vpop.permute.xlu0 %1368
          %1372 = vset.pattern.permute.xlu0 0
          %1373 = vperm.xlu0 %1372, %v1315
          %v1374 = vpop.permute.xlu0 %1373
          %1377 = vset.pattern.permute.xlu0 0
          %1378 = vperm.xlu0 %1377, %v1316
          %v1379 = vpop.permute.xlu0 %1378
          %1382 = vset.pattern.permute.xlu0 0
          %1383 = vperm.xlu0 %1382, %v1317
          %v1384 = vpop.permute.xlu0 %1383
          %1387 = vset.pattern.permute.xlu0 0
          %1388 = vperm.xlu0 %1387, %v1318
          %v1389 = vpop.permute.xlu0 %1388
          %1392 = vset.pattern.permute.xlu0 0
          %1393 = vperm.xlu0 %1392, %v1319
          %v1394 = vpop.permute.xlu0 %1393
          %1397 = vset.pattern.permute.xlu0 0
          %1398 = vperm.xlu0 %1397, %v1320
          %v1399 = vpop.permute.xlu0 %1398
          %v1401 = vmul.f32 %v1243, %v1324
          %v1402 = vmul.f32 %v1246, %v1329
          %v1403 = vmul.f32 %v1251, %v1334
          %v1404 = vmul.f32 %v1254, %v1339
          %v1405 = vmul.f32 %v1259, %v1344
          %v1406 = vmul.f32 %v1262, %v1349
          %v1407 = vmul.f32 %v1267, %v1354
          %v1408 = vmul.f32 %v1270, %v1359
          %v1409 = vmul.f32 %v1275, %v1364
          %v1410 = vmul.f32 %v1278, %v1369
          %v1411 = vmul.f32 %v1283, %v1374
          %v1412 = vmul.f32 %v1286, %v1379
          %v1413 = vmul.f32 %v1291, %v1384
          %v1414 = vmul.f32 %v1294, %v1389
          %v1415 = vmul.f32 %v1299, %v1394
          %v1416 = vmul.f32 %v1302, %v1399
          %v1417 = vpack.c.bf16 %v1402, %v1401
          %v1418 = vpack.c.bf16 %v1404, %v1403
          %v1419 = vpack.c.bf16 %v1406, %v1405
          %v1420 = vpack.c.bf16 %v1408, %v1407
          %v1421 = vpack.c.bf16 %v1410, %v1409
          %v1422 = vpack.c.bf16 %v1412, %v1411
          %v1423 = vpack.c.bf16 %v1414, %v1413
          %v1424 = vpack.c.bf16 %v1416, %v1415
          %v1425 = vld [vmem:[%s671] sm:$0x1]
          %v1426 = vlaneseq
          %v1427 = vshrl.u32 %v1426, 7
          %v1428 = vadd.s32 %v1427, 8
          %v1429 = vlaneseq
          %v1430 = vshrl.u32 %v1429, 7
          %v1431 = vsub.s32 0, %v1430
          %v1432 = vrot.slane %v1425, %v1431
          %vm1433 = vcmp.eq.s32.totalorder %v1432, %v1427
          %vm1434 = vcmp.eq.s32.totalorder %v1432, %v1428
          %v1435 = vsel %vm1433, 1, 0
          %v1436 = vsel %vm1434, 1, 0
          %v1437 = vcvt.s32.f32 %v1435
          %v1438 = vcvt.s32.f32 %v1436
          %v1439 = vpack.c.bf16 %v1438, %v1437
          %v1440 = vld [vmem:[#allocation6] sm:$0xff]
          %v1441 = vld [vmem:[#allocation6 + $0x8] sm:$0xff]
          %1442 = vmatprep.subr.bf16.mxu0 0
          %1443 = vmatpush1.bf16.msra.mxu0 %v1417
          %1444 = vmatprep.subr.bf16.mxu0 0
          %1445 = vmatpush1.bf16.msra.mxu0 %v1418
          %1446 = vmatprep.subr.bf16.mxu0 0
          %1447 = vmatpush1.bf16.msra.mxu0 %v1419
          %1448 = vmatprep.subr.bf16.mxu0 0
          %1449 = vmatpush1.bf16.msra.mxu0 %v1420
          %1450 = vmatprep.subr.bf16.mxu0 0
          %1451 = vmatpush1.bf16.msra.mxu0 %v1421
          %1452 = vmatprep.subr.bf16.mxu0 0
          %1453 = vmatpush1.bf16.msra.mxu0 %v1422
          %1454 = vmatprep.subr.bf16.mxu0 0
          %1455 = vmatpush1.bf16.msra.mxu0 %v1423
          %1456 = vmatprep.subr.bf16.mxu0 0
          %1457 = vmatpush1.bf16.msra.mxu0 %v1424
          %1458 = vmatprep.subr.bf16.mxu0 0
          %1459 = vmatpush1.bf16.msra.mxu0 0
          %1460 = vmatprep.subr.bf16.mxu0 0
          %1461 = vmatpush1.bf16.msra.mxu0 0
          %1462 = vmatprep.subr.bf16.mxu0 0
          %1463 = vmatpush1.bf16.msra.mxu0 0
          %1464 = vmatprep.subr.bf16.mxu0 0
          %1465 = vmatpush1.bf16.msra.mxu0 0
          %1466 = vmatprep.subr.bf16.mxu0 0
          %1467 = vmatpush1.bf16.msra.mxu0 0
          %1468 = vmatprep.subr.bf16.mxu0 0
          %1469 = vmatpush1.bf16.msra.mxu0 0
          %1470 = vmatprep.subr.bf16.mxu0 0
          %1471 = vmatpush1.bf16.msra.mxu0 0
          %1472 = vmatprep.subr.bf16.mxu0 0
          %1473 = vmatpush1.bf16.msra.mxu0 0
          %1474 = vmatprep.mubr.bf16.mxu0 0
          %1475 = vmatmul.mubr.bf16.gmra.mrb[0].mxu0 %v1439
          %v1476 = vpop.f32.mrb[0].mxu0
          %v1477 = vadd.f32 0.0, %v1476
          %v1478 = vpop.f32.mrb[0].mxu0
          %v1479 = vpop.f32.mrb[0].mxu0
          %v1480 = vadd.f32 0.0, %v1479
          %v1481 = vpop.f32.mrb[0].mxu0
          %1482 = vdwg.mxu0
          %v1483 = vadd.f32 %v1440, %v1477
          %v1484 = vadd.f32 %v1441, %v1480
          %1485 = vst [vmem:[#allocation6] sm:$0xff] %v1483
          %1486 = vst [vmem:[#allocation6 + $0x8] sm:$0xff] %v1484
        $region96: #{tpu_custom_call.1} parent=83 // pred_fallthru
          _
        // Predicated region
        $region97: #{tpu_custom_call.1} parent=83 // pred_check
          %p1487 = pneg %p904
        $region98: #{tpu_custom_call.1} parent=83 // pred_check_branch
          %1489 = sbr.rel (%p1487) target = $region100
        $region99: #{tpu_custom_call.1} parent=83 // pred_region
          %v1490 = vld [vmem:[%s679] sm:$0xff]
          %v1491 = vld [vmem:[%s679 + $0x8] sm:$0xff]
          %v1492 = vld [vmem:[%s679 + $0x10] sm:$0xff]
          %v1493 = vld [vmem:[%s679 + $0x18] sm:$0xff]
          %v1494 = vld [vmem:[%s679 + $0x20] sm:$0xff]
          %v1495 = vld [vmem:[%s679 + $0x28] sm:$0xff]
          %v1496 = vld [vmem:[%s679 + $0x30] sm:$0xff]
          %v1497 = vld [vmem:[%s679 + $0x38] sm:$0xff]
          %v1498 = vld [vmem:[%s679 + $0x40] sm:$0xff]
          %v1499 = vld [vmem:[%s679 + $0x48] sm:$0xff]
          %v1500 = vld [vmem:[%s679 + $0x50] sm:$0xff]
          %v1501 = vld [vmem:[%s679 + $0x58] sm:$0xff]
          %v1502 = vld [vmem:[%s679 + $0x60] sm:$0xff]
          %v1503 = vld [vmem:[%s679 + $0x68] sm:$0xff]
          %v1504 = vld [vmem:[%s679 + $0x70] sm:$0xff]
          %v1505 = vld [vmem:[%s679 + $0x78] sm:$0xff]
          %v1506 = vlaneseq
          %v1507 = vand.u32 %v1506, 127
          %1508 = vset.pattern.permute.xlu0 0
          %1509 = vperm.xlu0 %1508, %v1490
          %v1510 = vpop.permute.xlu0 %1509
          %1511 = vset.pattern.permute.xlu0 0
          %1512 = vperm.xlu0 %1511, %v1491
          %v1513 = vpop.permute.xlu0 %1512
          %1514 = vset.pattern.permute.xlu0 0
          %1515 = vperm.xlu0 %1514, %v1492
          %v1516 = vpop.permute.xlu0 %1515
          %1517 = vset.pattern.permute.xlu0 0
          %1518 = vperm.xlu0 %1517, %v1493
          %v1519 = vpop.permute.xlu0 %1518
          %1520 = vset.pattern.permute.xlu0 0
          %1521 = vperm.xlu0 %1520, %v1494
          %v1522 = vpop.permute.xlu0 %1521
          %1523 = vset.pattern.permute.xlu0 0
          %1524 = vperm.xlu0 %1523, %v1495
          %v1525 = vpop.permute.xlu0 %1524
          %1526 = vset.pattern.permute.xlu0 0
          %1527 = vperm.xlu0 %1526, %v1496
          %v1528 = vpop.permute.xlu0 %1527
          %1529 = vset.pattern.permute.xlu0 0
          %1530 = vperm.xlu0 %1529, %v1497
          %v1531 = vpop.permute.xlu0 %1530
          %1532 = vset.pattern.permute.xlu0 0
          %1533 = vperm.xlu0 %1532, %v1498
          %v1534 = vpop.permute.xlu0 %1533
          %1535 = vset.pattern.permute.xlu0 0
          %1536 = vperm.xlu0 %1535, %v1499
          %v1537 = vpop.permute.xlu0 %1536
          %1538 = vset.pattern.permute.xlu0 0
          %1539 = vperm.xlu0 %1538, %v1500
          %v1540 = vpop.permute.xlu0 %1539
          %1541 = vset.pattern.permute.xlu0 0
          %1542 = vperm.xlu0 %1541, %v1501
          %v1543 = vpop.permute.xlu0 %1542
          %1544 = vset.pattern.permute.xlu0 0
          %1545 = vperm.xlu0 %1544, %v1502
          %v1546 = vpop.permute.xlu0 %1545
          %1547 = vset.pattern.permute.xlu0 0
          %1548 = vperm.xlu0 %1547, %v1503
          %v1549 = vpop.permute.xlu0 %1548
          %1550 = vset.pattern.permute.xlu0 0
          %1551 = vperm.xlu0 %1550, %v1504
          %v1552 = vpop.permute.xlu0 %1551
          %1553 = vset.pattern.permute.xlu0 0
          %1554 = vperm.xlu0 %1553, %v1505
          %v1555 = vpop.permute.xlu0 %1554
          %vm1556 = vcmp.eq.s32.totalorder %v1510, %v1507
          %vm1557 = vcmp.eq.s32.totalorder %v1513, %v1507
          %vm1558 = vcmp.eq.s32.totalorder %v1516, %v1507
          %vm1559 = vcmp.eq.s32.totalorder %v1519, %v1507
          %vm1560 = vcmp.eq.s32.totalorder %v1522, %v1507
          %vm1561 = vcmp.eq.s32.totalorder %v1525, %v1507
          %vm1562 = vcmp.eq.s32.totalorder %v1528, %v1507
          %vm1563 = vcmp.eq.s32.totalorder %v1531, %v1507
          %vm1564 = vcmp.eq.s32.totalorder %v1534, %v1507
          %vm1565 = vcmp.eq.s32.totalorder %v1537, %v1507
          %vm1566 = vcmp.eq.s32.totalorder %v1540, %v1507
          %vm1567 = vcmp.eq.s32.totalorder %v1543, %v1507
          %vm1568 = vcmp.eq.s32.totalorder %v1546, %v1507
          %vm1569 = vcmp.eq.s32.totalorder %v1549, %v1507
          %vm1570 = vcmp.eq.s32.totalorder %v1552, %v1507
          %vm1571 = vcmp.eq.s32.totalorder %v1555, %v1507
          %v1572 = vsel %vm1556, 1, 0
          %v1573 = vsel %vm1557, 1, 0
          %v1574 = vsel %vm1558, 1, 0
          %v1575 = vsel %vm1559, 1, 0
          %v1576 = vsel %vm1560, 1, 0
          %v1577 = vsel %vm1561, 1, 0
          %v1578 = vsel %vm1562, 1, 0
          %v1579 = vsel %vm1563, 1, 0
          %v1580 = vsel %vm1564, 1, 0
          %v1581 = vsel %vm1565, 1, 0
          %v1582 = vsel %vm1566, 1, 0
          %v1583 = vsel %vm1567, 1, 0
          %v1584 = vsel %vm1568, 1, 0
          %v1585 = vsel %vm1569, 1, 0
          %v1586 = vsel %vm1570, 1, 0
          %v1587 = vsel %vm1571, 1, 0
          %v1588 = vcvt.s32.f32 %v1572
          %v1589 = vcvt.s32.f32 %v1573
          %v1590 = vcvt.s32.f32 %v1574
          %v1591 = vcvt.s32.f32 %v1575
          %v1592 = vcvt.s32.f32 %v1576
          %v1593 = vcvt.s32.f32 %v1577
          %v1594 = vcvt.s32.f32 %v1578
          %v1595 = vcvt.s32.f32 %v1579
          %v1596 = vcvt.s32.f32 %v1580
          %v1597 = vcvt.s32.f32 %v1581
          %v1598 = vcvt.s32.f32 %v1582
          %v1599 = vcvt.s32.f32 %v1583
          %v1600 = vcvt.s32.f32 %v1584
          %v1601 = vcvt.s32.f32 %v1585
          %v1602 = vcvt.s32.f32 %v1586
          %v1603 = vcvt.s32.f32 %v1587
          %v1604 = vpack.c.bf16 %v1589, %v1588
          %v1605 = vpack.c.bf16 %v1591, %v1590
          %v1606 = vpack.c.bf16 %v1593, %v1592
          %v1607 = vpack.c.bf16 %v1595, %v1594
          %v1608 = vpack.c.bf16 %v1597, %v1596
          %v1609 = vpack.c.bf16 %v1599, %v1598
          %v1610 = vpack.c.bf16 %v1601, %v1600
          %v1611 = vpack.c.bf16 %v1603, %v1602
          %v1612 = vld [vmem:[#allocation3] sm:$0xff]
          %vm1613 = vcmask 130048
          %v1615 = vsel %vm1613, %v1604, 0
          %v1618 = vsel %vm1613, %v1605, 0
          %v1621 = vsel %vm1613, %v1606, 0
          %v1624 = vsel %vm1613, %v1607, 0
          %v1627 = vsel %vm1613, %v1608, 0
          %v1630 = vsel %vm1613, %v1609, 0
          %v1633 = vsel %vm1613, %v1610, 0
          %v1636 = vsel %vm1613, %v1611, 0
          %1638 = vmatprep.subr.bf16.mxu0 0
          %1639 = vmatpush1.bf16.msra.mxu0 %v1612
          %1640 = vmatprep.subr.bf16.mxu0 0
          %1641 = vmatpush1.bf16.msra.mxu0 0
          %1642 = vmatprep.subr.bf16.mxu0 0
          %1643 = vmatpush1.bf16.msra.mxu0 0
          %1644 = vmatprep.subr.bf16.mxu0 0
          %1645 = vmatpush1.bf16.msra.mxu0 0
          %1646 = vmatprep.subr.bf16.mxu0 0
          %1647 = vmatpush1.bf16.msra.mxu0 0
          %1648 = vmatprep.subr.bf16.mxu0 0
          %1649 = vmatpush1.bf16.msra.mxu0 0
          %1650 = vmatprep.subr.bf16.mxu0 0
          %1651 = vmatpush1.bf16.msra.mxu0 0
          %1652 = vmatprep.subr.bf16.mxu0 0
          %1653 = vmatpush1.bf16.msra.mxu0 0
          %1654 = vmatprep.subr.bf16.mxu0 0
          %1655 = vmatpush1.bf16.msra.mxu0 0
          %1656 = vmatprep.subr.bf16.mxu0 0
          %1657 = vmatpush1.bf16.msra.mxu0 0
          %1658 = vmatprep.subr.bf16.mxu0 0
          %1659 = vmatpush1.bf16.msra.mxu0 0
          %1660 = vmatprep.subr.bf16.mxu0 0
          %1661 = vmatpush1.bf16.msra.mxu0 0
          %1662 = vmatprep.subr.bf16.mxu0 0
          %1663 = vmatpush1.bf16.msra.mxu0 0
          %1664 = vmatprep.subr.bf16.mxu0 0
          %1665 = vmatpush1.bf16.msra.mxu0 0
          %1666 = vmatprep.subr.bf16.mxu0 0
          %1667 = vmatpush1.bf16.msra.mxu0 0
          %1668 = vmatprep.subr.bf16.mxu0 0
          %1669 = vmatpush1.bf16.msra.mxu0 0
          %1670 = vmatprep.mubr.bf16.mxu0 0
          %1671 = vmatmul.mubr.bf16.gmra.mrb[0].mxu0 %v1615
          %v1672 = vpop.f32.mrb[0].mxu0
          %v1673 = vadd.f32 0.0, %v1672
          %v1674 = vpop.f32.mrb[0].mxu0
          %v1675 = vpop.f32.mrb[0].mxu0
          %v1676 = vadd.f32 0.0, %v1675
          %v1677 = vpop.f32.mrb[0].mxu0
          %1678 = vmatprep.mubr.bf16.mxu0 0
          %1679 = vmatmul.mubr.bf16.gmra.mrb[0].mxu0 %v1618
          %v1680 = vpop.f32.mrb[0].mxu0
          %v1681 = vadd.f32 0.0, %v1680
          %v1682 = vpop.f32.mrb[0].mxu0
          %v1683 = vpop.f32.mrb[0].mxu0
          %v1684 = vadd.f32 0.0, %v1683
          %v1685 = vpop.f32.mrb[0].mxu0
          %1686 = vmatprep.mubr.bf16.mxu0 0
          %1687 = vmatmul.mubr.bf16.gmra.mrb[0].mxu0 %v1621
          %v1688 = vpop.f32.mrb[0].mxu0
          %v1689 = vadd.f32 0.0, %v1688
          %v1690 = vpop.f32.mrb[0].mxu0
          %v1691 = vpop.f32.mrb[0].mxu0
          %v1692 = vadd.f32 0.0, %v1691
          %v1693 = vpop.f32.mrb[0].mxu0
          %1694 = vmatprep.mubr.bf16.mxu0 0
          %1695 = vmatmul.mubr.bf16.gmra.mrb[0].mxu0 %v1624
          %v1696 = vpop.f32.mrb[0].mxu0
          %v1697 = vadd.f32 0.0, %v1696
          %v1698 = vpop.f32.mrb[0].mxu0
          %v1699 = vpop.f32.mrb[0].mxu0
          %v1700 = vadd.f32 0.0, %v1699
          %v1701 = vpop.f32.mrb[0].mxu0
          %1702 = vmatprep.mubr.bf16.mxu0 0
          %1703 = vmatmul.mubr.bf16.gmra.mrb[0].mxu0 %v1627
          %v1704 = vpop.f32.mrb[0].mxu0
          %v1705 = vadd.f32 0.0, %v1704
          %v1706 = vpop.f32.mrb[0].mxu0
          %v1707 = vpop.f32.mrb[0].mxu0
          %v1708 = vadd.f32 0.0, %v1707
          %v1709 = vpop.f32.mrb[0].mxu0
          %1710 = vmatprep.mubr.bf16.mxu0 0
          %1711 = vmatmul.mubr.bf16.gmra.mrb[0].mxu0 %v1630
          %v1712 = vpop.f32.mrb[0].mxu0
          %v1713 = vadd.f32 0.0, %v1712
          %v1714 = vpop.f32.mrb[0].mxu0
          %v1715 = vpop.f32.mrb[0].mxu0
          %v1716 = vadd.f32 0.0, %v1715
          %v1717 = vpop.f32.mrb[0].mxu0
          %1718 = vmatprep.mubr.bf16.mxu0 0
          %1719 = vmatmul.mubr.bf16.gmra.mrb[0].mxu0 %v1633
          %v1720 = vpop.f32.mrb[0].mxu0
          %v1721 = vadd.f32 0.0, %v1720
          %v1722 = vpop.f32.mrb[0].mxu0
          %v1723 = vpop.f32.mrb[0].mxu0
          %v1724 = vadd.f32 0.0, %v1723
          %v1725 = vpop.f32.mrb[0].mxu0
          %1726 = vmatprep.mubr.bf16.mxu0 0
          %1727 = vmatmul.mubr.bf16.gmra.mrb[0].mxu0 %v1636
          %v1728 = vpop.f32.mrb[0].mxu0
          %v1729 = vadd.f32 0.0, %v1728
          %v1730 = vpop.f32.mrb[0].mxu0
          %v1731 = vpop.f32.mrb[0].mxu0
          %v1732 = vadd.f32 0.0, %v1731
          %v1733 = vpop.f32.mrb[0].mxu0
          %1734 = vdwg.mxu0
          %v1735 = vld [vmem:[%s702] sm:$0xff]
          %v1736 = vld [vmem:[%s702 + $0x8] sm:$0xff]
          %v1737 = vld [vmem:[%s702 + $0x10] sm:$0xff]
          %v1738 = vld [vmem:[%s702 + $0x18] sm:$0xff]
          %v1739 = vld [vmem:[%s702 + $0x20] sm:$0xff]
          %v1740 = vld [vmem:[%s702 + $0x28] sm:$0xff]
          %v1741 = vld [vmem:[%s702 + $0x30] sm:$0xff]
          %v1742 = vld [vmem:[%s702 + $0x38] sm:$0xff]
          %v1743 = vld [vmem:[%s702 + $0x40] sm:$0xff]
          %v1744 = vld [vmem:[%s702 + $0x48] sm:$0xff]
          %v1745 = vld [vmem:[%s702 + $0x50] sm:$0xff]
          %v1746 = vld [vmem:[%s702 + $0x58] sm:$0xff]
          %v1747 = vld [vmem:[%s702 + $0x60] sm:$0xff]
          %v1748 = vld [vmem:[%s702 + $0x68] sm:$0xff]
          %v1749 = vld [vmem:[%s702 + $0x70] sm:$0xff]
          %v1750 = vld [vmem:[%s702 + $0x78] sm:$0xff]
          %1752 = vset.pattern.permute.xlu0 0
          %1753 = vperm.xlu0 %1752, %v1735
          %v1754 = vpop.permute.xlu0 %1753
          %1757 = vset.pattern.permute.xlu0 0
          %1758 = vperm.xlu0 %1757, %v1736
          %v1759 = vpop.permute.xlu0 %1758
          %1762 = vset.pattern.permute.xlu0 0
          %1763 = vperm.xlu0 %1762, %v1737
          %v1764 = vpop.permute.xlu0 %1763
          %1767 = vset.pattern.permute.xlu0 0
          %1768 = vperm.xlu0 %1767, %v1738
          %v1769 = vpop.permute.xlu0 %1768
          %1772 = vset.pattern.permute.xlu0 0
          %1773 = vperm.xlu0 %1772, %v1739
          %v1774 = vpop.permute.xlu0 %1773
          %1777 = vset.pattern.permute.xlu0 0
          %1778 = vperm.xlu0 %1777, %v1740
          %v1779 = vpop.permute.xlu0 %1778
          %1782 = vset.pattern.permute.xlu0 0
          %1783 = vperm.xlu0 %1782, %v1741
          %v1784 = vpop.permute.xlu0 %1783
          %1787 = vset.pattern.permute.xlu0 0
          %1788 = vperm.xlu0 %1787, %v1742
          %v1789 = vpop.permute.xlu0 %1788
          %1792 = vset.pattern.permute.xlu0 0
          %1793 = vperm.xlu0 %1792, %v1743
          %v1794 = vpop.permute.xlu0 %1793
          %1797 = vset.pattern.permute.xlu0 0
          %1798 = vperm.xlu0 %1797, %v1744
          %v1799 = vpop.permute.xlu0 %1798
          %1802 = vset.pattern.permute.xlu0 0
          %1803 = vperm.xlu0 %1802, %v1745
          %v1804 = vpop.permute.xlu0 %1803
          %1807 = vset.pattern.permute.xlu0 0
          %1808 = vperm.xlu0 %1807, %v1746
          %v1809 = vpop.permute.xlu0 %1808
          %1812 = vset.pattern.permute.xlu0 0
          %1813 = vperm.xlu0 %1812, %v1747
          %v1814 = vpop.permute.xlu0 %1813
          %1817 = vset.pattern.permute.xlu0 0
          %1818 = vperm.xlu0 %1817, %v1748
          %v1819 = vpop.permute.xlu0 %1818
          %1822 = vset.pattern.permute.xlu0 0
          %1823 = vperm.xlu0 %1822, %v1749
          %v1824 = vpop.permute.xlu0 %1823
          %1827 = vset.pattern.permute.xlu0 0
          %1828 = vperm.xlu0 %1827, %v1750
          %v1829 = vpop.permute.xlu0 %1828
          %v1831 = vmul.f32 %v1673, %v1754
          %v1832 = vmul.f32 %v1676, %v1759
          %v1833 = vmul.f32 %v1681, %v1764
          %v1834 = vmul.f32 %v1684, %v1769
          %v1835 = vmul.f32 %v1689, %v1774
          %v1836 = vmul.f32 %v1692, %v1779
          %v1837 = vmul.f32 %v1697, %v1784
          %v1838 = vmul.f32 %v1700, %v1789
          %v1839 = vmul.f32 %v1705, %v1794
          %v1840 = vmul.f32 %v1708, %v1799
          %v1841 = vmul.f32 %v1713, %v1804
          %v1842 = vmul.f32 %v1716, %v1809
          %v1843 = vmul.f32 %v1721, %v1814
          %v1844 = vmul.f32 %v1724, %v1819
          %v1845 = vmul.f32 %v1729, %v1824
          %v1846 = vmul.f32 %v1732, %v1829
          %v1847 = vpack.c.bf16 %v1832, %v1831
          %v1848 = vpack.c.bf16 %v1834, %v1833
          %v1849 = vpack.c.bf16 %v1836, %v1835
          %v1850 = vpack.c.bf16 %v1838, %v1837
          %v1851 = vpack.c.bf16 %v1840, %v1839
          %v1852 = vpack.c.bf16 %v1842, %v1841
          %v1853 = vpack.c.bf16 %v1844, %v1843
          %v1854 = vpack.c.bf16 %v1846, %v1845
          %v1855 = vld [vmem:[%s685] sm:$0x1]
          %v1856 = vlaneseq
          %v1857 = vshrl.u32 %v1856, 7
          %v1858 = vadd.s32 %v1857, 8
          %v1859 = vadd.s32 %v1857, 16
          %v1860 = vlaneseq
          %v1861 = vshrl.u32 %v1860, 7
          %v1862 = vsub.s32 0, %v1861
          %v1863 = vrot.slane %v1855, %v1862
          %vm1864 = vcmp.eq.s32.totalorder %v1863, %v1857
          %vm1865 = vcmp.eq.s32.totalorder %v1863, %v1858
          %vm1866 = vcmp.eq.s32.totalorder %v1863, %v1859
          %v1867 = vsel %vm1864, 1, 0
          %v1868 = vsel %vm1865, 1, 0
          %v1869 = vsel %vm1866, 1, 0
          %v1870 = vcvt.s32.f32 %v1867
          %v1871 = vcvt.s32.f32 %v1868
          %v1872 = vcvt.s32.f32 %v1869
          %v1873 = vpack.c.bf16 %v1871, %v1870
          %v1874 = vpack.c.bf16 %v1872, %v1872
          %v1875 = vld [vmem:[#allocation4] sm:$0xff]
          %v1876 = vld [vmem:[#allocation4 + $0x8] sm:$0xff]
          %v1877 = vld [vmem:[#allocation4 + $0x10] sm:$0xff]
          %1878 = vmatprep.subr.bf16.mxu0 0
          %1879 = vmatpush1.bf16.msra.mxu0 %v1847
          %1880 = vmatprep.subr.bf16.mxu0 0
          %1881 = vmatpush1.bf16.msra.mxu0 %v1848
          %1882 = vmatprep.subr.bf16.mxu0 0
          %1883 = vmatpush1.bf16.msra.mxu0 %v1849
          %1884 = vmatprep.subr.bf16.mxu0 0
          %1885 = vmatpush1.bf16.msra.mxu0 %v1850
          %1886 = vmatprep.subr.bf16.mxu0 0
          %1887 = vmatpush1.bf16.msra.mxu0 %v1851
          %1888 = vmatprep.subr.bf16.mxu0 0
          %1889 = vmatpush1.bf16.msra.mxu0 %v1852
          %1890 = vmatprep.subr.bf16.mxu0 0
          %1891 = vmatpush1.bf16.msra.mxu0 %v1853
          %1892 = vmatprep.subr.bf16.mxu0 0
          %1893 = vmatpush1.bf16.msra.mxu0 %v1854
          %1894 = vmatprep.subr.bf16.mxu0 0
          %1895 = vmatpush1.bf16.msra.mxu0 0
          %1896 = vmatprep.subr.bf16.mxu0 0
          %1897 = vmatpush1.bf16.msra.mxu0 0
          %1898 = vmatprep.subr.bf16.mxu0 0
          %1899 = vmatpush1.bf16.msra.mxu0 0
          %1900 = vmatprep.subr.bf16.mxu0 0
          %1901 = vmatpush1.bf16.msra.mxu0 0
          %1902 = vmatprep.subr.bf16.mxu0 0
          %1903 = vmatpush1.bf16.msra.mxu0 0
          %1904 = vmatprep.subr.bf16.mxu0 0
          %1905 = vmatpush1.bf16.msra.mxu0 0
          %1906 = vmatprep.subr.bf16.mxu0 0
          %1907 = vmatpush1.bf16.msra.mxu0 0
          %1908 = vmatprep.subr.bf16.mxu0 0
          %1909 = vmatpush1.bf16.msra.mxu0 0
          %1910 = vmatprep.mubr.bf16.mxu0 0
          %1911 = vmatmul.mubr.bf16.gmra.mrb[0].mxu0 %v1873
          %v1912 = vpop.f32.mrb[0].mxu0
          %v1913 = vadd.f32 0.0, %v1912
          %v1914 = vpop.f32.mrb[0].mxu0
          %v1915 = vpop.f32.mrb[0].mxu0
          %v1916 = vadd.f32 0.0, %v1915
          %v1917 = vpop.f32.mrb[0].mxu0
          %1918 = vmatprep.mubr.bf16.mxu0 0
          %1919 = vmatmul.mubr.bf16.gmra.mrb[0].mxu0 %v1874
          %v1920 = vpop.f32.mrb[0].mxu0
          %v1921 = vadd.f32 0.0, %v1920
          %v1922 = vpop.f32.mrb[0].mxu0
          %v1923 = vpop.f32.mrb[0].mxu0
          %v1924 = vpop.f32.mrb[0].mxu0
          %1925 = vdwg.mxu0
          %v1926 = vadd.f32 %v1875, %v1913
          %v1927 = vadd.f32 %v1876, %v1916
          %v1928 = vadd.f32 %v1877, %v1921
          %1929 = vst [vmem:[#allocation4] sm:$0xff] %v1926
          %1930 = vst [vmem:[#allocation4 + $0x8] sm:$0xff] %v1927
          %1931 = vst [vmem:[#allocation4 + $0x10] sm:$0xff] %v1928
        $region100: #{tpu_custom_call.1} parent=83 // pred_fallthru
          _
        %p1932 = scmp.eq.s32.totalorder %s36, 2
        %p1933 = pnand %p706, %p1932
        %p1934 = pneg %p1933
        // Predicated region
        $region101: #{tpu_custom_call.1} parent=83 // pred_check
          _
        $region102: #{tpu_custom_call.1} parent=83 // pred_check_branch
          %1936 = sbr.rel (%p1933) target = $region104
        $region103: #{tpu_custom_call.1} parent=83 // pred_region
          %v1937 = vld [vmem:[#allocation6] sm:$0xff]
          %v1938 = vld [vmem:[#allocation6 + $0x8] sm:$0xff]
          %v1939 = vld [vmem:[%s14] sm:$0xff]
          %v1940 = vld [vmem:[%s14 + $0x8] sm:$0xff]
          %1942 = vset.pattern.permute.xlu0 0
          %1943 = vperm.xlu0 %1942, %v1939
          %v1944 = vpop.permute.xlu0 %1943
          %1947 = vset.pattern.permute.xlu0 0
          %1948 = vperm.xlu0 %1947, %v1940
          %v1949 = vpop.permute.xlu0 %1948
          %v1951 = vmul.f32 %v1937, %v1944
          %v1952 = vmul.f32 %v1938, %v1949
          %1953 = vst [vmem:[#allocation6] sm:$0xff] %v1951
          %1954 = vst [vmem:[#allocation6 + $0x8] sm:$0xff] %v1952
        $region104: #{tpu_custom_call.1} parent=83 // pred_fallthru
          _
        %p1955 = pnand %p904, %p1932
        %p1956 = pneg %p1955
        // Predicated region
        $region105: #{tpu_custom_call.1} parent=83 // pred_check
          _
        $region106: #{tpu_custom_call.1} parent=83 // pred_check_branch
          %1958 = sbr.rel (%p1955) target = $region108
        $region107: #{tpu_custom_call.1} parent=83 // pred_region
          %v1959 = vld [vmem:[#allocation4] sm:$0xff]
          %v1960 = vld [vmem:[#allocation4 + $0x8] sm:$0xff]
          %v1961 = vld [vmem:[#allocation4 + $0x10] sm:$0xff]
          %v1962 = vld [vmem:[%s15] sm:$0xff]
          %v1963 = vld [vmem:[%s15 + $0x8] sm:$0xff]
          %v1964 = vld [vmem:[%s15 + $0x10] sm:$0xff]
          %1966 = vset.pattern.permute.xlu0 0
          %1967 = vperm.xlu0 %1966, %v1962
          %v1968 = vpop.permute.xlu0 %1967
          %1971 = vset.pattern.permute.xlu0 0
          %1972 = vperm.xlu0 %1971, %v1963
          %v1973 = vpop.permute.xlu0 %1972
          %1976 = vset.pattern.permute.xlu0 0
          %1977 = vperm.xlu0 %1976, %v1964
          %v1978 = vpop.permute.xlu0 %1977
          %v1980 = vmul.f32 %v1959, %v1968
          %v1981 = vmul.f32 %v1960, %v1973
          %v1982 = vmul.f32 %v1961, %v1978
          %1983 = vst [vmem:[#allocation4] sm:$0xff] %v1980
          %1984 = vst [vmem:[#allocation4 + $0x8] sm:$0xff] %v1981
          %1985 = vst [vmem:[#allocation4 + $0x10] sm:$0xff] %v1982
        $region108: #{tpu_custom_call.1} parent=83 // pred_fallthru
          _
        // Predicated region
        $region109: #{tpu_custom_call.1} parent=83 // pred_check
          %p1986 = pneg %p440
        $region110: #{tpu_custom_call.1} parent=83 // pred_check_branch
          %1988 = sbr.rel (%p1986) target = $region112
        $region111: #{tpu_custom_call.1} parent=83 // pred_region
          %s1990 = ssub.s32 384, 384
          %1991 = vsyncadd [#allocation5], %s1990
          %s1992 = sshll.u32 [#allocation4], 4
          %s1993 = int_to_ptr.vmem [resolvable:$true] %s1992
          %1998 = dma.vmem_to_hbm [thread:$0]  %s1993, 384, %s16, [#allocation5], 128, 128, 8
        $region112: #{tpu_custom_call.1} parent=83 // pred_fallthru
          _
        // Predicated region
        $region113: #{tpu_custom_call.1} parent=83 // pred_check
          %p1999 = pneg %p461
        $region114: #{tpu_custom_call.1} parent=83 // pred_check_branch
          %2001 = sbr.rel (%p1999) target = $region116
        $region115: #{tpu_custom_call.1} parent=83 // pred_region
          %s2003 = ssub.s32 256, 256
          %2004 = vsyncadd [#allocation7], %s2003
          %s2005 = sshll.u32 [#allocation6], 4
          %s2006 = int_to_ptr.vmem [resolvable:$true] %s2005
          %2011 = dma.vmem_to_hbm [thread:$0]  %s2006, 256, %s17, [#allocation7], 128, 128, 8
        $region116: #{tpu_custom_call.1} parent=83 // pred_fallthru
          _
        // Predicated region
        $region117: #{tpu_custom_call.1} parent=83 // pred_check
          %p2012 = pneg %p440
        $region118: #{tpu_custom_call.1} parent=83 // pred_check_branch
          %2014 = sbr.rel (%p2012) target = $region120
        $region119: #{tpu_custom_call.1} parent=83 // pred_region
          %2015 = dma.done [#allocation5], 384
        $region120: #{tpu_custom_call.1} parent=83 // pred_fallthru
          _
        // Predicated region
        $region121: #{tpu_custom_call.1} parent=83 // pred_check
          %p2016 = pneg %p461
        $region122: #{tpu_custom_call.1} parent=83 // pred_check_branch
          %2018 = sbr.rel (%p2016) target = $region124
        $region123: #{tpu_custom_call.1} parent=83 // pred_region
          %2019 = dma.done [#allocation7], 256
        $region124: #{tpu_custom_call.1} parent=83 // pred_fallthru
          _
      $region84: #{tpu_custom_call.1} parent=5 // pred_fallthru
        _
      %p2020 = scmp.le.s32.totalorder 2, %s26
      // Predicated region
      $region125: #{tpu_custom_call.1} parent=5 // pred_check
        %p2021 = pneg %p2020
      $region126: #{tpu_custom_call.1} parent=5 // pred_check_branch
        %2023 = sbr.rel (%p2021) target = $region128
      $region127: #{tpu_custom_call.1} parent=5 // pred_region
        %s2024 = ssub.s32 %s26, 2
      $region128: #{tpu_custom_call.1} parent=5 // pred_fallthru
        _
    $region6: #{tpu_custom_call.1} parent=1 // loop_footer
      %s30 = sadd.s32 1, %s26
    $region7: #{tpu_custom_call.1} parent=1 // loop_footer_branch
      %25 = sbr.rel target = $region3
    $region8: #{tpu_custom_call.1} parent=1 // loop_exit
      _
    %2025 = vsyncpa [#allocation5], 1
    %s2026 = scalar_lea.sflag [#allocation5], 1
    %2027 = vsyncpa %s2026, 1
    %2028 = vsyncpa [#allocation7], 1

</llo_original>
